<compile_context>
chip_gen: v7x
topology: tpu7x:2x2x1
jax: 0.10.0
libtpu: 0.0.40
codegen_flags: <defaults>
</compile_context>

<pallas_src>
import math

import jax
import jax.numpy as jnp
from jax.experimental import pallas as pl
from jax.experimental.pallas import tpu as pltpu


# ---------------------------------------------------------------------------
# Bounded-range sine (pure VPU): Cody-Waite reduction + odd polynomial.
# ---------------------------------------------------------------------------
_INV_PI = 0.3183098861837907       # 1/pi
_PI_HI = 3.140625                  # 8 significand bits -> k*_PI_HI exact for |k| < 2^15
_PI_MID = 9.6765358979311599e-04   # pi - _PI_HI (cast to f32 at trace time)
# Odd Taylor coefficients of sin on [-pi/2, pi/2]; truncation error < 6e-8.
_S3 = -1.0 / 6.0
_S5 = 1.0 / 120.0
_S7 = -1.0 / 5040.0
_S9 = 1.0 / 362880.0
_S11 = -1.0 / 39916800.0


def _bounded_sin(x):
    """sin(x) for |x| up to ~1e3 (covers post-fold SIREN pre-activations).

    Cheaper than XLA's generic sin (which carries full-range reduction and
    special-value handling); absolute error ~1e-6, everything stays on the VPU.
    """
    # Nearest integer multiple of pi (floor(t+0.5); exact tie direction is
    # irrelevant since the polynomial is valid slightly past +-pi/2).
    k = jnp.floor(x * _INV_PI + 0.5)
    r = x - k * _PI_HI
    r = r - k * _PI_MID                      # r in [-pi/2, pi/2] (+ ~1e-6)
    r2 = r * r
    p = _S11
    p = p * r2 + _S9
    p = p * r2 + _S7
    p = p * r2 + _S5
    p = p * r2 + _S3
    p = p * r2 + 1.0
    p = p * r                                # sin(r)
    # sin(x) = (-1)^k * sin(r)
    k_odd = (k.astype(jnp.int32) & 1) != 0
    return jnp.where(k_odd, -p, p)


# ---------------------------------------------------------------------------
# Kernel
# ---------------------------------------------------------------------------
def make_siren_kernel(n_layers):
    def kernel(x_ref, *refs):
        # refs = (W0, b0, W1, b1, ..., W_{L-1}, b_{L-1}, out_ref)
        o_ref = refs[-1]
        wb = refs[:-1]

        # h is [features, tile_n]: the big N axis stays on the lane dimension.
        h = x_ref[...].astype(jnp.float32)
        for li in range(n_layers):
            w = wb[2 * li][...]          # (d_out, d_in) -- frequency pre-folded
            b = wb[2 * li + 1][...]      # (d_out, 1)    -- broadcasts along lanes
            # Tiny matmuls stay on the (otherwise idle) MXU: free filler while
            # the VALU slot binds on the sine polynomial.
            h = jnp.dot(w, h, preferred_element_type=jnp.float32) + b
            if li < n_layers - 1:
                h = _bounded_sin(h)      # sine activation (w0 already folded in)
            # last layer: Identity
        o_ref[...] = h.astype(o_ref.dtype)

    return kernel


# ---------------------------------------------------------------------------
# Lane-dense forward (copy-free entry point): [d_in, N] -> [d_out, N]
# ---------------------------------------------------------------------------
def siren_net_forward_t(x_t, weights, biases, *, w0=1.0, w0_initial=30.0,
                        tile_n=8192):
    """x_t: [d_in, N]; weights[i]: (d_out_i, d_in_i) (PyTorch orientation);
    biases[i]: (d_out_i, 1). Returns [d_out_last, N] (lane-dense)."""
    d_in, n = x_t.shape
    d_out = weights[-1].shape[0]
    n_lin = len(weights)
    if n_lin < 2:
        # SirenNet always builds initial + final (+ hidden) layers; a 1-layer
        # net would make the frequency folding ambiguous, so reject it.
        raise ValueError(f"SirenNet needs >= 2 linear layers, got {n_lin}.")

    out_dtype = x_t.dtype

    # Fold sine frequencies into the parameters (algebraically exact):
    #   sin(s * (W h + b)) == sin((s W) h + s b).   Last layer is Identity.
    scales = [float(w0_initial)] + [float(w0)] * (n_lin - 2) + [1.0]
    params = []
    for w, b, s in zip(weights, biases, scales):
        params.append((s * w).astype(jnp.float32))
        params.append((s * b).astype(jnp.float32))

    # Lane-dense tiling over the point axis.
    n_lanes = ((n + 127) // 128) * 128
    tile_n = max(128, (int(tile_n) // 128) * 128)
    tile_n = min(tile_n, n_lanes)
    # v7x has 2 TensorCores per chip: ensure the "parallel" grid has >= 2
    # steps whenever N allows (harmless on single-TC v5e/v6e).
    if n_lanes >= 256:
        tile_n = min(tile_n, max(128, (n_lanes // 2 // 128) * 128))
    n_padded = ((n_lanes + tile_n - 1) // tile_n) * tile_n

    x_t = x_t.astype(jnp.float32)
    if n_padded != n:
        x_t = jnp.pad(x_t, ((0, 0), (0, n_padded - n)))

    kernel = make_siren_kernel(n_lin)
    hidden_max = max(int(w.shape[0]) for w in weights)

    # Advisory cost estimate so XLA schedules neighbors sensibly.
    flops = 2 * n_padded * sum(int(w.shape[0]) * int(w.shape[1]) for w in weights)
    transcendentals = n_padded * sum(int(w.shape[0]) for w in weights[:-1])
    bytes_accessed = 4 * (d_in + d_out) * n_padded + sum(
        4 * (int(w.size) + int(b.size)) for w, b in zip(weights, biases))

    # Raise the scoped-VMEM limit only when the tile actually needs it
    # (v5e default scoped VMEM is 16 MiB vs 32 MiB on v6e/v7x).
    est_vmem = (4 * (d_in + d_out) * tile_n * 2            # double-buffered I/O
                + 8 * sum(int(p.size) for p in params)     # params (<=2 buffers)
                + 4 * hidden_max * tile_n * 4)             # live intermediates
    compiler_kwargs = dict(dimension_semantics=("parallel",))
    if est_vmem > 12 * 1024 * 1024:
        compiler_kwargs["vmem_limit_bytes"] = min(int(est_vmem * 1.5), 100 << 20)

    def _const_spec(shape, single_buffered):
        idx_map = lambda i: (0,) * len(shape)
        if single_buffered:
            # Constant index_map -> the block never changes; one VMEM buffer
            # suffices (avoids a useless second copy of each parameter).
            return pl.BlockSpec(shape, idx_map, pipeline_mode=pl.Buffered(1))
        return pl.BlockSpec(shape, idx_map)

    def _call(single_buffer_params):
        in_specs = [pl.BlockSpec((d_in, tile_n), lambda i: (0, i))]
        for w, b in zip(weights, biases):
            in_specs.append(_const_spec(tuple(w.shape), single_buffer_params))
            in_specs.append(_const_spec(tuple(b.shape), single_buffer_params))
        out_spec = pl.BlockSpec((d_out, tile_n), lambda i: (0, i))
        return pl.pallas_call(
            kernel,
            out_shape=jax.ShapeDtypeStruct((d_out, n_padded), out_dtype),
            grid_spec=pltpu.PrefetchScalarGridSpec(
                num_scalar_prefetch=0,
                grid=(n_padded // tile_n,),
                in_specs=in_specs,
                out_specs=out_spec,
            ),
            compiler_params=pltpu.CompilerParams(**compiler_kwargs),
            cost_estimate=pl.CostEstimate(
                flops=flops,
                transcendentals=transcendentals,
                bytes_accessed=bytes_accessed,
            ),
        )(x_t, *params)

    try:
        out_t = _call(True)
    except Exception:
        # This JAX version rejected pipeline_mode=pl.Buffered(1) on pallas_call
        # BlockSpecs; double-buffering a few KiB of parameters is harmless.
        out_t = _call(False)

    if n_padded != n:
        out_t = out_t[:, :n]
    return out_t


def siren_net_forward(x, weights, biases, *, w0=1.0, w0_initial=30.0,
                      tile_n=8192):
    """PyTorch-layout convenience wrapper: [N, d_in] -> [N, d_out].

    Note: the two transposes here are extra whole-array HBM copies; callers
    that can produce/consume the lane-dense layout should use
    siren_net_forward_t directly.
    """
    return siren_net_forward_t(x.T, weights, biases, w0=w0,
                               w0_initial=w0_initial, tile_n=tile_n).T


# ---------------------------------------------------------------------------
# Parameter init + pure-JAX reference (mirrors the PyTorch module semantics)
# ---------------------------------------------------------------------------
def init_siren_params(key, input_size, hidden_size, output_size=3,
                      hidden_layers=1, w0=1.0, c=6.0):
    """Matches SirenNet.__init__: every Linear's weight AND bias
    ~ Uniform(-w_std, w_std). Weights in PyTorch (out, in) orientation,
    biases as (out, 1) columns."""
    w_std_hidden = math.sqrt(c / hidden_size) / w0
    dims = [input_size, hidden_size] + [hidden_size] * hidden_layers + [output_size]
    stds = [1.0 / input_size] + [w_std_hidden] * (hidden_layers + 1)

    weights, biases = [], []
    for din, dout, std in zip(dims[:-1], dims[1:], stds):
        key, kw, kb = jax.random.split(key, 3)
        w = jax.random.uniform(kw, (dout, din), jnp.float32, minval=-std, maxval=std)
        b = jax.random.uniform(kb, (dout, 1), jnp.float32, minval=-std, maxval=std)
        weights.append(w)
        biases.append(b)
    return weights, biases


def siren_net_reference(x, weights, biases, *, w0=1.0, w0_initial=30.0):
    """Pure-JAX reference with the original (unfolded) parameters."""
    h = x
    n_lin = len(weights)
    for li, (w, b) in enumerate(zip(weights, biases)):
        h = h @ w.T + b[:, 0]
        if li == 0:
            h = jnp.sin(w0_initial * h)
        elif li < n_lin - 1:
            h = jnp.sin(w0 * h)
    return h


if __name__ == "__main__":
    # Small shapes consistent with a SIREN: (x, y) coords -> RGB.
    INPUT_SIZE = 2
    HIDDEN_SIZE = 32
    OUTPUT_SIZE = 3
    HIDDEN_LAYERS = 1
    W0, W0_INITIAL = 1.0, 30.0
    N = 256               # number of query points

    key = jax.random.PRNGKey(0)
    key, kx = jax.random.split(key)
    x = jax.random.uniform(kx, (N, INPUT_SIZE), jnp.float32, minval=-1.0, maxval=1.0)

    weights, biases = init_siren_params(
        key, INPUT_SIZE, HIDDEN_SIZE, OUTPUT_SIZE, HIDDEN_LAYERS, w0=W0, c=6.0)

    ref = siren_net_reference(x, weights, biases, w0=W0, w0_initial=W0_INITIAL)

    # Copy-free lane-dense entry point ([d_in, N] -> [d_out, N]).
    out_t = siren_net_forward_t(x.T, weights, biases, w0=W0, w0_initial=W0_INITIAL)
    out_t = jax.block_until_ready(out_t)
    assert out_t.shape == (OUTPUT_SIZE, N)
    assert jnp.allclose(out_t.T, ref, atol=1e-4, rtol=1e-4), "mismatch (lane-dense path)"

    # PyTorch-layout wrapper (module semantics: [N, d_in] -> [N, d_out]).
    out = siren_net_forward(x, weights, biases, w0=W0, w0_initial=W0_INITIAL)
    out = jax.block_until_ready(out)
    assert out.shape == (N, OUTPUT_SIZE)
    assert jnp.allclose(out, ref, atol=1e-4, rtol=1e-4), "mismatch vs JAX reference"

    print("KERNEL_OK")
</pallas_src>

<mosaic_0001>
module attributes {stable_mosaic.version = 11 : i64} {
  func.func @kernel(%arg0: i32, %arg1: memref<2x128xf32, #tpu.memory_space<vmem>>, %arg2: memref<32x2xf32, #tpu.memory_space<vmem>>, %arg3: memref<32x1xf32, #tpu.memory_space<vmem>>, %arg4: memref<32x32xf32, #tpu.memory_space<vmem>>, %arg5: memref<32x1xf32, #tpu.memory_space<vmem>>, %arg6: memref<3x32xf32, #tpu.memory_space<vmem>>, %arg7: memref<3x1xf32, #tpu.memory_space<vmem>>, %arg8: memref<3x128xf32, #tpu.memory_space<vmem>>) attributes {dimension_semantics = [#tpu.dimension_semantics<parallel>], iteration_bounds = array<i64: 2>, scalar_prefetch = 0 : i64, scratch_operands = 0 : i64, tpu.core_type = #tpu.core_type<tc>, window_params = [{transform_indices = @transform_0, window_bounds = array<i64: 2, 128>}, {pipeline_mode = #tpu.pipeline_mode<synchronous>, transform_indices = @transform_1, window_bounds = array<i64: 32, 2>}, {pipeline_mode = #tpu.pipeline_mode<synchronous>, transform_indices = @transform_2, window_bounds = array<i64: 32, 1>}, {pipeline_mode = #tpu.pipeline_mode<synchronous>, transform_indices = @transform_3, window_bounds = array<i64: 32, 32>}, {pipeline_mode = #tpu.pipeline_mode<synchronous>, transform_indices = @transform_4, window_bounds = array<i64: 32, 1>}, {pipeline_mode = #tpu.pipeline_mode<synchronous>, transform_indices = @transform_5, window_bounds = array<i64: 3, 32>}, {pipeline_mode = #tpu.pipeline_mode<synchronous>, transform_indices = @transform_6, window_bounds = array<i64: 3, 1>}, {transform_indices = @transform_7, window_bounds = array<i64: 3, 128>}]} {
    %c0 = arith.constant 0 : index
    %c0_0 = arith.constant 0 : index
    %0 = vector.load %arg1[%c0, %c0_0] : memref<2x128xf32, #tpu.memory_space<vmem>>, vector<2x128xf32>
    %c0_1 = arith.constant 0 : index
    %c0_2 = arith.constant 0 : index
    %1 = vector.load %arg2[%c0_1, %c0_2] : memref<32x2xf32, #tpu.memory_space<vmem>>, vector<32x2xf32>
    %c0_3 = arith.constant 0 : index
    %c0_4 = arith.constant 0 : index
    %2 = vector.load %arg3[%c0_3, %c0_4] : memref<32x1xf32, #tpu.memory_space<vmem>>, vector<32x1xf32>
    %cst = arith.constant dense<0.000000e+00> : vector<32x128xf32>
    %3 = tpu.matmul %1, %0, %cst {dimension_numbers = #tpu.dot_dimension_numbers<[1], [0], [0], [1], [0, 0, 1, 1], [], []>} : vector<32x2xf32>, vector<2x128xf32>, vector<32x128xf32> -> vector<32x128xf32>
    %4 = vector.broadcast %2 : vector<32x1xf32> to vector<32x128xf32>
    %5 = arith.addf %3, %4 : vector<32x128xf32>
    %cst_5 = arith.constant 0.318309873 : f32
    %6 = vector.broadcast %cst_5 : f32 to vector<32x128xf32>
    %7 = arith.mulf %5, %6 : vector<32x128xf32>
    %cst_6 = arith.constant 5.000000e-01 : f32
    %8 = vector.broadcast %cst_6 : f32 to vector<32x128xf32>
    %9 = arith.addf %7, %8 : vector<32x128xf32>
    %10 = math.floor %9 : vector<32x128xf32>
    %cst_7 = arith.constant 3.140625 : f32
    %11 = vector.broadcast %cst_7 : f32 to vector<32x128xf32>
    %12 = arith.mulf %10, %11 : vector<32x128xf32>
    %13 = arith.subf %5, %12 : vector<32x128xf32>
    %cst_8 = arith.constant 9.67653584E-4 : f32
    %14 = vector.broadcast %cst_8 : f32 to vector<32x128xf32>
    %15 = arith.mulf %10, %14 : vector<32x128xf32>
    %16 = arith.subf %13, %15 : vector<32x128xf32>
    %17 = arith.mulf %16, %16 : vector<32x128xf32>
    %cst_9 = arith.constant -2.50521079E-8 : f32
    %18 = vector.broadcast %cst_9 : f32 to vector<32x128xf32>
    %19 = arith.mulf %18, %17 : vector<32x128xf32>
    %cst_10 = arith.constant 2.75573188E-6 : f32
    %20 = vector.broadcast %cst_10 : f32 to vector<32x128xf32>
    %21 = arith.addf %19, %20 : vector<32x128xf32>
    %22 = arith.mulf %21, %17 : vector<32x128xf32>
    %cst_11 = arith.constant -1.98412701E-4 : f32
    %23 = vector.broadcast %cst_11 : f32 to vector<32x128xf32>
    %24 = arith.addf %22, %23 : vector<32x128xf32>
    %25 = arith.mulf %24, %17 : vector<32x128xf32>
    %cst_12 = arith.constant 0.00833333377 : f32
    %26 = vector.broadcast %cst_12 : f32 to vector<32x128xf32>
    %27 = arith.addf %25, %26 : vector<32x128xf32>
    %28 = arith.mulf %27, %17 : vector<32x128xf32>
    %cst_13 = arith.constant -0.166666672 : f32
    %29 = vector.broadcast %cst_13 : f32 to vector<32x128xf32>
    %30 = arith.addf %28, %29 : vector<32x128xf32>
    %31 = arith.mulf %30, %17 : vector<32x128xf32>
    %cst_14 = arith.constant 1.000000e+00 : f32
    %32 = vector.broadcast %cst_14 : f32 to vector<32x128xf32>
    %33 = arith.addf %31, %32 : vector<32x128xf32>
    %34 = arith.mulf %33, %16 : vector<32x128xf32>
    %35 = arith.fptosi %10 : vector<32x128xf32> to vector<32x128xi32>
    %c1_i32 = arith.constant 1 : i32
    %36 = vector.broadcast %c1_i32 : i32 to vector<32x128xi32>
    %37 = arith.andi %35, %36 : vector<32x128xi32>
    %c0_i32 = arith.constant 0 : i32
    %38 = vector.broadcast %c0_i32 : i32 to vector<32x128xi32>
    %39 = arith.cmpi ne, %37, %38 : vector<32x128xi32>
    %cst_15 = arith.constant 0.000000e+00 : f32
    %40 = vector.broadcast %cst_15 : f32 to vector<32x128xf32>
    %41 = arith.subf %40, %34 : vector<32x128xf32>
    %42 = arith.select %39, %41, %34 : vector<32x128xi1>, vector<32x128xf32>
    %c0_16 = arith.constant 0 : index
    %c0_17 = arith.constant 0 : index
    %43 = vector.load %arg4[%c0_16, %c0_17] : memref<32x32xf32, #tpu.memory_space<vmem>>, vector<32x32xf32>
    %c0_18 = arith.constant 0 : index
    %c0_19 = arith.constant 0 : index
    %44 = vector.load %arg5[%c0_18, %c0_19] : memref<32x1xf32, #tpu.memory_space<vmem>>, vector<32x1xf32>
    %cst_20 = arith.constant dense<0.000000e+00> : vector<32x128xf32>
    %45 = tpu.matmul %43, %42, %cst_20 {dimension_numbers = #tpu.dot_dimension_numbers<[1], [0], [0], [1], [0, 0, 1, 1], [], []>} : vector<32x32xf32>, vector<32x128xf32>, vector<32x128xf32> -> vector<32x128xf32>
    %46 = vector.broadcast %44 : vector<32x1xf32> to vector<32x128xf32>
    %47 = arith.addf %45, %46 : vector<32x128xf32>
    %cst_21 = arith.constant 0.318309873 : f32
    %48 = vector.broadcast %cst_21 : f32 to vector<32x128xf32>
    %49 = arith.mulf %47, %48 : vector<32x128xf32>
    %cst_22 = arith.constant 5.000000e-01 : f32
    %50 = vector.broadcast %cst_22 : f32 to vector<32x128xf32>
    %51 = arith.addf %49, %50 : vector<32x128xf32>
    %52 = math.floor %51 : vector<32x128xf32>
    %cst_23 = arith.constant 3.140625 : f32
    %53 = vector.broadcast %cst_23 : f32 to vector<32x128xf32>
    %54 = arith.mulf %52, %53 : vector<32x128xf32>
    %55 = arith.subf %47, %54 : vector<32x128xf32>
    %cst_24 = arith.constant 9.67653584E-4 : f32
    %56 = vector.broadcast %cst_24 : f32 to vector<32x128xf32>
    %57 = arith.mulf %52, %56 : vector<32x128xf32>
    %58 = arith.subf %55, %57 : vector<32x128xf32>
    %59 = arith.mulf %58, %58 : vector<32x128xf32>
    %cst_25 = arith.constant -2.50521079E-8 : f32
    %60 = vector.broadcast %cst_25 : f32 to vector<32x128xf32>
    %61 = arith.mulf %60, %59 : vector<32x128xf32>
    %cst_26 = arith.constant 2.75573188E-6 : f32
    %62 = vector.broadcast %cst_26 : f32 to vector<32x128xf32>
    %63 = arith.addf %61, %62 : vector<32x128xf32>
    %64 = arith.mulf %63, %59 : vector<32x128xf32>
    %cst_27 = arith.constant -1.98412701E-4 : f32
    %65 = vector.broadcast %cst_27 : f32 to vector<32x128xf32>
    %66 = arith.addf %64, %65 : vector<32x128xf32>
    %67 = arith.mulf %66, %59 : vector<32x128xf32>
    %cst_28 = arith.constant 0.00833333377 : f32
    %68 = vector.broadcast %cst_28 : f32 to vector<32x128xf32>
    %69 = arith.addf %67, %68 : vector<32x128xf32>
    %70 = arith.mulf %69, %59 : vector<32x128xf32>
    %cst_29 = arith.constant -0.166666672 : f32
    %71 = vector.broadcast %cst_29 : f32 to vector<32x128xf32>
    %72 = arith.addf %70, %71 : vector<32x128xf32>
    %73 = arith.mulf %72, %59 : vector<32x128xf32>
    %cst_30 = arith.constant 1.000000e+00 : f32
    %74 = vector.broadcast %cst_30 : f32 to vector<32x128xf32>
    %75 = arith.addf %73, %74 : vector<32x128xf32>
    %76 = arith.mulf %75, %58 : vector<32x128xf32>
    %77 = arith.fptosi %52 : vector<32x128xf32> to vector<32x128xi32>
    %c1_i32_31 = arith.constant 1 : i32
    %78 = vector.broadcast %c1_i32_31 : i32 to vector<32x128xi32>
    %79 = arith.andi %77, %78 : vector<32x128xi32>
    %c0_i32_32 = arith.constant 0 : i32
    %80 = vector.broadcast %c0_i32_32 : i32 to vector<32x128xi32>
    %81 = arith.cmpi ne, %79, %80 : vector<32x128xi32>
    %cst_33 = arith.constant 0.000000e+00 : f32
    %82 = vector.broadcast %cst_33 : f32 to vector<32x128xf32>
    %83 = arith.subf %82, %76 : vector<32x128xf32>
    %84 = arith.select %81, %83, %76 : vector<32x128xi1>, vector<32x128xf32>
    %c0_34 = arith.constant 0 : index
    %c0_35 = arith.constant 0 : index
    %85 = vector.load %arg6[%c0_34, %c0_35] : memref<3x32xf32, #tpu.memory_space<vmem>>, vector<3x32xf32>
    %c0_36 = arith.constant 0 : index
    %c0_37 = arith.constant 0 : index
    %86 = vector.load %arg7[%c0_36, %c0_37] : memref<3x1xf32, #tpu.memory_space<vmem>>, vector<3x1xf32>
    %cst_38 = arith.constant dense<0.000000e+00> : vector<3x128xf32>
    %87 = tpu.matmul %85, %84, %cst_38 {dimension_numbers = #tpu.dot_dimension_numbers<[1], [0], [0], [1], [0, 0, 1, 1], [], []>} : vector<3x32xf32>, vector<32x128xf32>, vector<3x128xf32> -> vector<3x128xf32>
    %88 = vector.broadcast %86 : vector<3x1xf32> to vector<3x128xf32>
    %89 = arith.addf %87, %88 : vector<3x128xf32>
    %c0_39 = arith.constant 0 : index
    %c0_40 = arith.constant 0 : index
    %90 = vector.load %arg8[%c0_39, %c0_40] : memref<3x128xf32, #tpu.memory_space<vmem>>, vector<3x128xf32>
    tpu.vector_store %arg8[%c0_39, %c0_40], %89 {strides = array<i32>} : memref<3x128xf32, #tpu.memory_space<vmem>>, vector<3x128xf32>,
    return
  }
  func.func @transform_0(%arg0: i32) -> (i32, i32) {
    %c0_i32 = arith.constant 0 : i32
    %c0_i32_0 = arith.constant 0 : i32
    return %c0_i32, %arg0 : i32, i32
  }
  func.func @transform_1(%arg0: i32) -> (i32, i32) {
    %c0_i32 = arith.constant 0 : i32
    %c0_i32_0 = arith.constant 0 : i32
    %c0_i32_1 = arith.constant 0 : i32
    return %c0_i32, %c0_i32_0 : i32, i32
  }
  func.func @transform_2(%arg0: i32) -> (i32, i32) {
    %c0_i32 = arith.constant 0 : i32
    %c0_i32_0 = arith.constant 0 : i32
    %c0_i32_1 = arith.constant 0 : i32
    return %c0_i32, %c0_i32_0 : i32, i32
  }
  func.func @transform_3(%arg0: i32) -> (i32, i32) {
    %c0_i32 = arith.constant 0 : i32
    %c0_i32_0 = arith.constant 0 : i32
    %c0_i32_1 = arith.constant 0 : i32
    return %c0_i32, %c0_i32_0 : i32, i32
  }
  func.func @transform_4(%arg0: i32) -> (i32, i32) {
    %c0_i32 = arith.constant 0 : i32
    %c0_i32_0 = arith.constant 0 : i32
    %c0_i32_1 = arith.constant 0 : i32
    return %c0_i32, %c0_i32_0 : i32, i32
  }
  func.func @transform_5(%arg0: i32) -> (i32, i32) {
    %c0_i32 = arith.constant 0 : i32
    %c0_i32_0 = arith.constant 0 : i32
    %c0_i32_1 = arith.constant 0 : i32
    return %c0_i32, %c0_i32_0 : i32, i32
  }
  func.func @transform_6(%arg0: i32) -> (i32, i32) {
    %c0_i32 = arith.constant 0 : i32
    %c0_i32_0 = arith.constant 0 : i32
    %c0_i32_1 = arith.constant 0 : i32
    return %c0_i32, %c0_i32_0 : i32, i32
  }
  func.func @transform_7(%arg0: i32) -> (i32, i32) {
    %c0_i32 = arith.constant 0 : i32
    %c0_i32_0 = arith.constant 0 : i32
    return %c0_i32, %arg0 : i32, i32
  }
}

module attributes {stable_mosaic.version = 11 : i64} {
  func.func @kernel(%arg0: i32, %arg1: memref<2x128xf32, #tpu.memory_space<vmem>>, %arg2: memref<32x2xf32, #tpu.memory_space<vmem>>, %arg3: memref<32x1xf32, #tpu.memory_space<vmem>>, %arg4: memref<32x32xf32, #tpu.memory_space<vmem>>, %arg5: memref<32x1xf32, #tpu.memory_space<vmem>>, %arg6: memref<3x32xf32, #tpu.memory_space<vmem>>, %arg7: memref<3x1xf32, #tpu.memory_space<vmem>>, %arg8: memref<3x128xf32, #tpu.memory_space<vmem>>) attributes {dimension_semantics = [#tpu.dimension_semantics<parallel>], iteration_bounds = array<i64: 2>, scalar_prefetch = 0 : i64, scratch_operands = 0 : i64, tpu.core_type = #tpu.core_type<tc>, window_params = [{transform_indices = @transform_0, window_bounds = array<i64: 2, 128>}, {pipeline_mode = #tpu.pipeline_mode<synchronous>, transform_indices = @transform_1, window_bounds = array<i64: 32, 2>}, {pipeline_mode = #tpu.pipeline_mode<synchronous>, transform_indices = @transform_2, window_bounds = array<i64: 32, 1>}, {pipeline_mode = #tpu.pipeline_mode<synchronous>, transform_indices = @transform_3, window_bounds = array<i64: 32, 32>}, {pipeline_mode = #tpu.pipeline_mode<synchronous>, transform_indices = @transform_4, window_bounds = array<i64: 32, 1>}, {pipeline_mode = #tpu.pipeline_mode<synchronous>, transform_indices = @transform_5, window_bounds = array<i64: 3, 32>}, {pipeline_mode = #tpu.pipeline_mode<synchronous>, transform_indices = @transform_6, window_bounds = array<i64: 3, 1>}, {transform_indices = @transform_7, window_bounds = array<i64: 3, 128>}]} {
    %c0 = arith.constant 0 : index
    %c0_0 = arith.constant 0 : index
    %0 = vector.load %arg1[%c0, %c0_0] : memref<2x128xf32, #tpu.memory_space<vmem>>, vector<2x128xf32>
    %c0_1 = arith.constant 0 : index
    %c0_2 = arith.constant 0 : index
    %1 = vector.load %arg2[%c0_1, %c0_2] : memref<32x2xf32, #tpu.memory_space<vmem>>, vector<32x2xf32>
    %c0_3 = arith.constant 0 : index
    %c0_4 = arith.constant 0 : index
    %2 = vector.load %arg3[%c0_3, %c0_4] : memref<32x1xf32, #tpu.memory_space<vmem>>, vector<32x1xf32>
    %cst = arith.constant dense<0.000000e+00> : vector<32x128xf32>
    %3 = tpu.matmul %1, %0, %cst {dimension_numbers = #tpu.dot_dimension_numbers<[1], [0], [0], [1], [0, 0, 1, 1], [], []>} : vector<32x2xf32>, vector<2x128xf32>, vector<32x128xf32> -> vector<32x128xf32>
    %4 = vector.broadcast %2 : vector<32x1xf32> to vector<32x128xf32>
    %5 = arith.addf %3, %4 : vector<32x128xf32>
    %cst_5 = arith.constant 0.318309873 : f32
    %6 = vector.broadcast %cst_5 : f32 to vector<32x128xf32>
    %7 = arith.mulf %5, %6 : vector<32x128xf32>
    %cst_6 = arith.constant 5.000000e-01 : f32
    %8 = vector.broadcast %cst_6 : f32 to vector<32x128xf32>
    %9 = arith.addf %7, %8 : vector<32x128xf32>
    %10 = math.floor %9 : vector<32x128xf32>
    %cst_7 = arith.constant 3.140625 : f32
    %11 = vector.broadcast %cst_7 : f32 to vector<32x128xf32>
    %12 = arith.mulf %10, %11 : vector<32x128xf32>
    %13 = arith.subf %5, %12 : vector<32x128xf32>
    %cst_8 = arith.constant 9.67653584E-4 : f32
    %14 = vector.broadcast %cst_8 : f32 to vector<32x128xf32>
    %15 = arith.mulf %10, %14 : vector<32x128xf32>
    %16 = arith.subf %13, %15 : vector<32x128xf32>
    %17 = arith.mulf %16, %16 : vector<32x128xf32>
    %cst_9 = arith.constant -2.50521079E-8 : f32
    %18 = vector.broadcast %cst_9 : f32 to vector<32x128xf32>
    %19 = arith.mulf %18, %17 : vector<32x128xf32>
    %cst_10 = arith.constant 2.75573188E-6 : f32
    %20 = vector.broadcast %cst_10 : f32 to vector<32x128xf32>
    %21 = arith.addf %19, %20 : vector<32x128xf32>
    %22 = arith.mulf %21, %17 : vector<32x128xf32>
    %cst_11 = arith.constant -1.98412701E-4 : f32
    %23 = vector.broadcast %cst_11 : f32 to vector<32x128xf32>
    %24 = arith.addf %22, %23 : vector<32x128xf32>
    %25 = arith.mulf %24, %17 : vector<32x128xf32>
    %cst_12 = arith.constant 0.00833333377 : f32
    %26 = vector.broadcast %cst_12 : f32 to vector<32x128xf32>
    %27 = arith.addf %25, %26 : vector<32x128xf32>
    %28 = arith.mulf %27, %17 : vector<32x128xf32>
    %cst_13 = arith.constant -0.166666672 : f32
    %29 = vector.broadcast %cst_13 : f32 to vector<32x128xf32>
    %30 = arith.addf %28, %29 : vector<32x128xf32>
    %31 = arith.mulf %30, %17 : vector<32x128xf32>
    %cst_14 = arith.constant 1.000000e+00 : f32
    %32 = vector.broadcast %cst_14 : f32 to vector<32x128xf32>
    %33 = arith.addf %31, %32 : vector<32x128xf32>
    %34 = arith.mulf %33, %16 : vector<32x128xf32>
    %35 = arith.fptosi %10 : vector<32x128xf32> to vector<32x128xi32>
    %c1_i32 = arith.constant 1 : i32
    %36 = vector.broadcast %c1_i32 : i32 to vector<32x128xi32>
    %37 = arith.andi %35, %36 : vector<32x128xi32>
    %c0_i32 = arith.constant 0 : i32
    %38 = vector.broadcast %c0_i32 : i32 to vector<32x128xi32>
    %39 = arith.cmpi ne, %37, %38 : vector<32x128xi32>
    %cst_15 = arith.constant 0.000000e+00 : f32
    %40 = vector.broadcast %cst_15 : f32 to vector<32x128xf32>
    %41 = arith.subf %40, %34 : vector<32x128xf32>
    %42 = arith.select %39, %41, %34 : vector<32x128xi1>, vector<32x128xf32>
    %c0_16 = arith.constant 0 : index
    %c0_17 = arith.constant 0 : index
    %43 = vector.load %arg4[%c0_16, %c0_17] : memref<32x32xf32, #tpu.memory_space<vmem>>, vector<32x32xf32>
    %c0_18 = arith.constant 0 : index
    %c0_19 = arith.constant 0 : index
    %44 = vector.load %arg5[%c0_18, %c0_19] : memref<32x1xf32, #tpu.memory_space<vmem>>, vector<32x1xf32>
    %cst_20 = arith.constant dense<0.000000e+00> : vector<32x128xf32>
    %45 = tpu.matmul %43, %42, %cst_20 {dimension_numbers = #tpu.dot_dimension_numbers<[1], [0], [0], [1], [0, 0, 1, 1], [], []>} : vector<32x32xf32>, vector<32x128xf32>, vector<32x128xf32> -> vector<32x128xf32>
    %46 = vector.broadcast %44 : vector<32x1xf32> to vector<32x128xf32>
    %47 = arith.addf %45, %46 : vector<32x128xf32>
    %cst_21 = arith.constant 0.318309873 : f32
    %48 = vector.broadcast %cst_21 : f32 to vector<32x128xf32>
    %49 = arith.mulf %47, %48 : vector<32x128xf32>
    %cst_22 = arith.constant 5.000000e-01 : f32
    %50 = vector.broadcast %cst_22 : f32 to vector<32x128xf32>
    %51 = arith.addf %49, %50 : vector<32x128xf32>
    %52 = math.floor %51 : vector<32x128xf32>
    %cst_23 = arith.constant 3.140625 : f32
    %53 = vector.broadcast %cst_23 : f32 to vector<32x128xf32>
    %54 = arith.mulf %52, %53 : vector<32x128xf32>
    %55 = arith.subf %47, %54 : vector<32x128xf32>
    %cst_24 = arith.constant 9.67653584E-4 : f32
    %56 = vector.broadcast %cst_24 : f32 to vector<32x128xf32>
    %57 = arith.mulf %52, %56 : vector<32x128xf32>
    %58 = arith.subf %55, %57 : vector<32x128xf32>
    %59 = arith.mulf %58, %58 : vector<32x128xf32>
    %cst_25 = arith.constant -2.50521079E-8 : f32
    %60 = vector.broadcast %cst_25 : f32 to vector<32x128xf32>
    %61 = arith.mulf %60, %59 : vector<32x128xf32>
    %cst_26 = arith.constant 2.75573188E-6 : f32
    %62 = vector.broadcast %cst_26 : f32 to vector<32x128xf32>
    %63 = arith.addf %61, %62 : vector<32x128xf32>
    %64 = arith.mulf %63, %59 : vector<32x128xf32>
    %cst_27 = arith.constant -1.98412701E-4 : f32
    %65 = vector.broadcast %cst_27 : f32 to vector<32x128xf32>
    %66 = arith.addf %64, %65 : vector<32x128xf32>
    %67 = arith.mulf %66, %59 : vector<32x128xf32>
    %cst_28 = arith.constant 0.00833333377 : f32
    %68 = vector.broadcast %cst_28 : f32 to vector<32x128xf32>
    %69 = arith.addf %67, %68 : vector<32x128xf32>
    %70 = arith.mulf %69, %59 : vector<32x128xf32>
    %cst_29 = arith.constant -0.166666672 : f32
    %71 = vector.broadcast %cst_29 : f32 to vector<32x128xf32>
    %72 = arith.addf %70, %71 : vector<32x128xf32>
    %73 = arith.mulf %72, %59 : vector<32x128xf32>
    %cst_30 = arith.constant 1.000000e+00 : f32
    %74 = vector.broadcast %cst_30 : f32 to vector<32x128xf32>
    %75 = arith.addf %73, %74 : vector<32x128xf32>
    %76 = arith.mulf %75, %58 : vector<32x128xf32>
    %77 = arith.fptosi %52 : vector<32x128xf32> to vector<32x128xi32>
    %c1_i32_31 = arith.constant 1 : i32
    %78 = vector.broadcast %c1_i32_31 : i32 to vector<32x128xi32>
    %79 = arith.andi %77, %78 : vector<32x128xi32>
    %c0_i32_32 = arith.constant 0 : i32
    %80 = vector.broadcast %c0_i32_32 : i32 to vector<32x128xi32>
    %81 = arith.cmpi ne, %79, %80 : vector<32x128xi32>
    %cst_33 = arith.constant 0.000000e+00 : f32
    %82 = vector.broadcast %cst_33 : f32 to vector<32x128xf32>
    %83 = arith.subf %82, %76 : vector<32x128xf32>
    %84 = arith.select %81, %83, %76 : vector<32x128xi1>, vector<32x128xf32>
    %c0_34 = arith.constant 0 : index
    %c0_35 = arith.constant 0 : index
    %85 = vector.load %arg6[%c0_34, %c0_35] : memref<3x32xf32, #tpu.memory_space<vmem>>, vector<3x32xf32>
    %c0_36 = arith.constant 0 : index
    %c0_37 = arith.constant 0 : index
    %86 = vector.load %arg7[%c0_36, %c0_37] : memref<3x1xf32, #tpu.memory_space<vmem>>, vector<3x1xf32>
    %cst_38 = arith.constant dense<0.000000e+00> : vector<3x128xf32>
    %87 = tpu.matmul %85, %84, %cst_38 {dimension_numbers = #tpu.dot_dimension_numbers<[1], [0], [0], [1], [0, 0, 1, 1], [], []>} : vector<3x32xf32>, vector<32x128xf32>, vector<3x128xf32> -> vector<3x128xf32>
    %88 = vector.broadcast %86 : vector<3x1xf32> to vector<3x128xf32>
    %89 = arith.addf %87, %88 : vector<3x128xf32>
    %c0_39 = arith.constant 0 : index
    %c0_40 = arith.constant 0 : index
    %90 = vector.load %arg8[%c0_39, %c0_40] : memref<3x128xf32, #tpu.memory_space<vmem>>, vector<3x128xf32>
    tpu.vector_store %arg8[%c0_39, %c0_40], %89 {strides = array<i32>} : memref<3x128xf32, #tpu.memory_space<vmem>>, vector<3x128xf32>,
    return
  }
  func.func @transform_0(%arg0: i32) -> (i32, i32) {
    %c0_i32 = arith.constant 0 : i32
    %c0_i32_0 = arith.constant 0 : i32
    return %c0_i32, %arg0 : i32, i32
  }
  func.func @transform_1(%arg0: i32) -> (i32, i32) {
    %c0_i32 = arith.constant 0 : i32
    %c0_i32_0 = arith.constant 0 : i32
    %c0_i32_1 = arith.constant 0 : i32
    return %c0_i32, %c0_i32_0 : i32, i32
  }
  func.func @transform_2(%arg0: i32) -> (i32, i32) {
    %c0_i32 = arith.constant 0 : i32
    %c0_i32_0 = arith.constant 0 : i32
    %c0_i32_1 = arith.constant 0 : i32
    return %c0_i32, %c0_i32_0 : i32, i32
  }
  func.func @transform_3(%arg0: i32) -> (i32, i32) {
    %c0_i32 = arith.constant 0 : i32
    %c0_i32_0 = arith.constant 0 : i32
    %c0_i32_1 = arith.constant 0 : i32
    return %c0_i32, %c0_i32_0 : i32, i32
  }
  func.func @transform_4(%arg0: i32) -> (i32, i32) {
    %c0_i32 = arith.constant 0 : i32
    %c0_i32_0 = arith.constant 0 : i32
    %c0_i32_1 = arith.constant 0 : i32
    return %c0_i32, %c0_i32_0 : i32, i32
  }
  func.func @transform_5(%arg0: i32) -> (i32, i32) {
    %c0_i32 = arith.constant 0 : i32
    %c0_i32_0 = arith.constant 0 : i32
    %c0_i32_1 = arith.constant 0 : i32
    return %c0_i32, %c0_i32_0 : i32, i32
  }
  func.func @transform_6(%arg0: i32) -> (i32, i32) {
    %c0_i32 = arith.constant 0 : i32
    %c0_i32_0 = arith.constant 0 : i32
    %c0_i32_1 = arith.constant 0 : i32
    return %c0_i32, %c0_i32_0 : i32, i32
  }
  func.func @transform_7(%arg0: i32) -> (i32, i32) {
    %c0_i32 = arith.constant 0 : i32
    %c0_i32_0 = arith.constant 0 : i32
    return %c0_i32, %arg0 : i32, i32
  }
}

</mosaic_0001>

<llo_original>
// kernel: tpu_custom_call.1
$region0: #{tpu_custom_call.1}
  #allocation0 [shape = 'u32[]', space=smem, size = 0x4, offset = 0x4, fixed_abs, tag = 'smem constant byte address 0x4 - core index']
  #allocation1 [shape = 'u32[144,128]{1,0:T(1,128)}', space=vmem, size = 0x12000, scoped, tag = 'internal scratch']
  %s0 = inlined_call_operand.vmem [shape: f32[2,256], index: 0, kind: input, shape index: {}]
  %s1 = inlined_call_operand.vmem [shape: f32[32,2], index: 1, kind: input, shape index: {}]
  %s2 = inlined_call_operand.vmem [shape: f32[32,1], index: 2, kind: input, shape index: {}]
  %s3 = inlined_call_operand.vmem [shape: f32[32,32], index: 3, kind: input, shape index: {}]
  %s4 = inlined_call_operand.vmem [shape: f32[32,1], index: 4, kind: input, shape index: {}]
  %s5 = inlined_call_operand.vmem [shape: f32[3,32], index: 5, kind: input, shape index: {}]
  %s6 = inlined_call_operand.vmem [shape: f32[3,1], index: 6, kind: input, shape index: {}]
  %s7 = inlined_call_operand.hbm [shape: f32[3,256], index: 7, kind: output, shape index: {}]
  %s8 = sld [smem:[#allocation0]]
  $region61: #{tpu_custom_call.1} parent=0
    _
  %s10 = ssub.s32 1, %s8
  %s11 = scalar_select 0, %s10, %s8
  $region1: #{tpu_custom_call.1} parent=0
    #allocation2 [shape = 'u8[4096]{0}', space=vmem, size = 0x1000, scoped, tag = 'output window, operand 0']
    #allocation3 [shape = 's32[2]{0}', space=sflag, size = 0x8, scoped, tag = 'scoped memory for tpu_custom_call.1']
    %12 = vsyncpa [#allocation3], 0
    %s13 = scalar_lea.sflag [#allocation3], 1
    %14 = vsyncpa %s13, 0
    loop: start=0, step=1, limit=4
    $region2: #{tpu_custom_call.1} parent=1 // loop_pre_header
      _
    $region3: #{tpu_custom_call.1} parent=1 // loop_header
      %s16 = sphi 0, %s20
      %p17 = scmp.ge.s32.totalorder %s16, 4
      %s26 = sphi 0, %s28
      %s29 = sphi 0, %s26
      %s30 = sphi 0, %s29
      %s46 = sphi 0, %s30
      %s50 = sphi 0, %s50
      %s52 = sphi 0, %s50
      %s53 = sphi 0, %s52
      %s67 = sphi 0, %s53
      %s71 = sphi 0, %s71
      %s73 = sphi 0, %s71
      %s74 = sphi 0, %s73
      %s88 = sphi 0, %s74
      %s92 = sphi 0, %s92
      %s94 = sphi 0, %s92
      %s95 = sphi 0, %s94
      %s109 = sphi 0, %s95
      %s113 = sphi 0, %s113
      %s115 = sphi 0, %s113
      %s116 = sphi 0, %s115
      %s130 = sphi 0, %s116
      %s134 = sphi 0, %s134
      %s136 = sphi 0, %s134
      %s137 = sphi 0, %s136
      %s151 = sphi 0, %s137
      %s155 = sphi 0, %s155
      %s157 = sphi 0, %s155
      %s158 = sphi 0, %s157
      %s172 = sphi 0, %s158
      %s178 = sphi 0, %s180
      %s181 = sphi 0, %s178
      %s182 = sphi 0, %s181
      %s198 = sphi 0, %s182
    $region4: #{tpu_custom_call.1} parent=1 // loop_header_branch
      %19 = sbr.rel (%p17) target = $region8
    $region5: #{tpu_custom_call.1} parent=1 // loop_body
      %s21 = ssub.s32 %s16, 1
      %s22 = ssub.s32 %s16, 2
      %s23 = sadd.s32 %s16, 1
      %s24 = ssub.s32 %s16, %s23
      %p25 = scmp.eq.s32.totalorder %s24, 0
      %s27 = sadd.s32 %s26, 1
      %s28 = scalar_select %p25, %s26, %s27
      %p31 = pneg %p25
      %p32 = scmp.eq.s32.totalorder %s16, 1
      %p33 = por %p31, %p32
      %p34 = scmp.ne.s32.totalorder %s26, %s29
      %p35 = scmp.eq.s32.totalorder %s16, 0
      %p36 = por %p34, %p35
      %p37 = scmp.ne.s32.totalorder %s26, %s29
      %p38 = scmp.eq.s32.totalorder %s21, 1
      %p39 = por %p37, %p38
      %p40 = scmp.ne.s32.totalorder %s29, %s30
      %p41 = scmp.eq.s32.totalorder %s21, 0
      %p42 = por %p40, %p41
      %p43 = scmp.ne.s32.totalorder %s29, %s30
      %p44 = scmp.eq.s32.totalorder %s22, 1
      %p45 = por %p43, %p44
      %p47 = scmp.ne.s32.totalorder %s30, %s46
      %p48 = scmp.eq.s32.totalorder %s22, 0
      %p49 = por %p47, %p48
      %s51 = sadd.s32 %s50, 1
      %p54 = scmp.eq.s32.totalorder %s16, 1
      %p55 = scmp.ne.s32.totalorder %s50, %s52
      %p56 = scmp.eq.s32.totalorder %s16, 0
      %p57 = por %p55, %p56
      %p58 = scmp.ne.s32.totalorder %s50, %s52
      %p59 = scmp.eq.s32.totalorder %s21, 1
      %p60 = por %p58, %p59
      %p61 = scmp.ne.s32.totalorder %s52, %s53
      %p62 = scmp.eq.s32.totalorder %s21, 0
      %p63 = por %p61, %p62
      %p64 = scmp.ne.s32.totalorder %s52, %s53
      %p65 = scmp.eq.s32.totalorder %s22, 1
      %p66 = por %p64, %p65
      %p68 = scmp.ne.s32.totalorder %s53, %s67
      %p69 = scmp.eq.s32.totalorder %s22, 0
      %p70 = por %p68, %p69
      %s72 = sadd.s32 %s71, 1
      %p75 = scmp.eq.s32.totalorder %s16, 1
      %p76 = scmp.ne.s32.totalorder %s71, %s73
      %p77 = scmp.eq.s32.totalorder %s16, 0
      %p78 = por %p76, %p77
      %p79 = scmp.ne.s32.totalorder %s71, %s73
      %p80 = scmp.eq.s32.totalorder %s21, 1
      %p81 = por %p79, %p80
      %p82 = scmp.ne.s32.totalorder %s73, %s74
      %p83 = scmp.eq.s32.totalorder %s21, 0
      %p84 = por %p82, %p83
      %p85 = scmp.ne.s32.totalorder %s73, %s74
      %p86 = scmp.eq.s32.totalorder %s22, 1
      %p87 = por %p85, %p86
      %p89 = scmp.ne.s32.totalorder %s74, %s88
      %p90 = scmp.eq.s32.totalorder %s22, 0
      %p91 = por %p89, %p90
      %s93 = sadd.s32 %s92, 1
      %p96 = scmp.eq.s32.totalorder %s16, 1
      %p97 = scmp.ne.s32.totalorder %s92, %s94
      %p98 = scmp.eq.s32.totalorder %s16, 0
      %p99 = por %p97, %p98
      %p100 = scmp.ne.s32.totalorder %s92, %s94
      %p101 = scmp.eq.s32.totalorder %s21, 1
      %p102 = por %p100, %p101
      %p103 = scmp.ne.s32.totalorder %s94, %s95
      %p104 = scmp.eq.s32.totalorder %s21, 0
      %p105 = por %p103, %p104
      %p106 = scmp.ne.s32.totalorder %s94, %s95
      %p107 = scmp.eq.s32.totalorder %s22, 1
      %p108 = por %p106, %p107
      %p110 = scmp.ne.s32.totalorder %s95, %s109
      %p111 = scmp.eq.s32.totalorder %s22, 0
      %p112 = por %p110, %p111
      %s114 = sadd.s32 %s113, 1
      %p117 = scmp.eq.s32.totalorder %s16, 1
      %p118 = scmp.ne.s32.totalorder %s113, %s115
      %p119 = scmp.eq.s32.totalorder %s16, 0
      %p120 = por %p118, %p119
      %p121 = scmp.ne.s32.totalorder %s113, %s115
      %p122 = scmp.eq.s32.totalorder %s21, 1
      %p123 = por %p121, %p122
      %p124 = scmp.ne.s32.totalorder %s115, %s116
      %p125 = scmp.eq.s32.totalorder %s21, 0
      %p126 = por %p124, %p125
      %p127 = scmp.ne.s32.totalorder %s115, %s116
      %p128 = scmp.eq.s32.totalorder %s22, 1
      %p129 = por %p127, %p128
      %p131 = scmp.ne.s32.totalorder %s116, %s130
      %p132 = scmp.eq.s32.totalorder %s22, 0
      %p133 = por %p131, %p132
      %s135 = sadd.s32 %s134, 1
      %p138 = scmp.eq.s32.totalorder %s16, 1
      %p139 = scmp.ne.s32.totalorder %s134, %s136
      %p140 = scmp.eq.s32.totalorder %s16, 0
      %p141 = por %p139, %p140
      %p142 = scmp.ne.s32.totalorder %s134, %s136
      %p143 = scmp.eq.s32.totalorder %s21, 1
      %p144 = por %p142, %p143
      %p145 = scmp.ne.s32.totalorder %s136, %s137
      %p146 = scmp.eq.s32.totalorder %s21, 0
      %p147 = por %p145, %p146
      %p148 = scmp.ne.s32.totalorder %s136, %s137
      %p149 = scmp.eq.s32.totalorder %s22, 1
      %p150 = por %p148, %p149
      %p152 = scmp.ne.s32.totalorder %s137, %s151
      %p153 = scmp.eq.s32.totalorder %s22, 0
      %p154 = por %p152, %p153
      %s156 = sadd.s32 %s155, 1
      %p159 = scmp.eq.s32.totalorder %s16, 1
      %p160 = scmp.ne.s32.totalorder %s155, %s157
      %p161 = scmp.eq.s32.totalorder %s16, 0
      %p162 = por %p160, %p161
      %p163 = scmp.ne.s32.totalorder %s155, %s157
      %p164 = scmp.eq.s32.totalorder %s21, 1
      %p165 = por %p163, %p164
      %p166 = scmp.ne.s32.totalorder %s157, %s158
      %p167 = scmp.eq.s32.totalorder %s21, 0
      %p168 = por %p166, %p167
      %p169 = scmp.ne.s32.totalorder %s157, %s158
      %p170 = scmp.eq.s32.totalorder %s22, 1
      %p171 = por %p169, %p170
      %p173 = scmp.ne.s32.totalorder %s158, %s172
      %p174 = scmp.eq.s32.totalorder %s22, 0
      %p175 = por %p173, %p174
      %s176 = ssub.s32 %s16, %s23
      %p177 = scmp.eq.s32.totalorder %s176, 0
      %s179 = sadd.s32 %s178, 1
      %s180 = scalar_select %p177, %s178, %s179
      %p183 = pneg %p177
      %p184 = scmp.eq.s32.totalorder %s16, 1
      %p185 = por %p183, %p184
      %p186 = scmp.ne.s32.totalorder %s178, %s181
      %p187 = scmp.eq.s32.totalorder %s16, 0
      %p188 = por %p186, %p187
      %p189 = scmp.ne.s32.totalorder %s178, %s181
      %p190 = scmp.eq.s32.totalorder %s21, 1
      %p191 = por %p189, %p190
      %p192 = scmp.ne.s32.totalorder %s181, %s182
      %p193 = scmp.eq.s32.totalorder %s21, 0
      %p194 = por %p192, %p193
      %p195 = scmp.ne.s32.totalorder %s181, %s182
      %p196 = scmp.eq.s32.totalorder %s22, 1
      %p197 = por %p195, %p196
      %p199 = scmp.ne.s32.totalorder %s182, %s198
      %p200 = scmp.eq.s32.totalorder %s22, 0
      %p201 = por %p199, %p200
      %p202 = scmp.le.s32.totalorder 1, %s16
      %p203 = scmp.lt.s32.totalorder %s16, 3
      %p204 = pnand %p202, %p203
      %p205 = pneg %p204
      // Predicated region
      $region9: #{tpu_custom_call.1} parent=5 // pred_check
        _
      $region10: #{tpu_custom_call.1} parent=5 // pred_check_branch
        %207 = sbr.rel (%p204) target = $region12
      $region11: #{tpu_custom_call.1} parent=5 // pred_region
        %s208 = ssub.s32 %s16, 1
        // Predicated region
        $region13: #{tpu_custom_call.1} parent=11 // pred_check
          %p209 = pneg %p63
        $region14: #{tpu_custom_call.1} parent=11 // pred_check_branch
          %211 = sbr.rel (%p209) target = $region16
        $region15: #{tpu_custom_call.1} parent=11 // pred_region
          _
        $region16: #{tpu_custom_call.1} parent=11 // pred_fallthru
          _
        // Predicated region
        $region17: #{tpu_custom_call.1} parent=11 // pred_check
          %p212 = pneg %p84
        $region18: #{tpu_custom_call.1} parent=11 // pred_check_branch
          %214 = sbr.rel (%p212) target = $region20
        $region19: #{tpu_custom_call.1} parent=11 // pred_region
          _
        $region20: #{tpu_custom_call.1} parent=11 // pred_fallthru
          _
        // Predicated region
        $region21: #{tpu_custom_call.1} parent=11 // pred_check
          %p215 = pneg %p105
        $region22: #{tpu_custom_call.1} parent=11 // pred_check_branch
          %217 = sbr.rel (%p215) target = $region24
        $region23: #{tpu_custom_call.1} parent=11 // pred_region
          _
        $region24: #{tpu_custom_call.1} parent=11 // pred_fallthru
          _
        // Predicated region
        $region25: #{tpu_custom_call.1} parent=11 // pred_check
          %p218 = pneg %p126
        $region26: #{tpu_custom_call.1} parent=11 // pred_check_branch
          %220 = sbr.rel (%p218) target = $region28
        $region27: #{tpu_custom_call.1} parent=11 // pred_region
          _
        $region28: #{tpu_custom_call.1} parent=11 // pred_fallthru
          _
        // Predicated region
        $region29: #{tpu_custom_call.1} parent=11 // pred_check
          %p221 = pneg %p147
        $region30: #{tpu_custom_call.1} parent=11 // pred_check_branch
          %223 = sbr.rel (%p221) target = $region32
        $region31: #{tpu_custom_call.1} parent=11 // pred_region
          _
        $region32: #{tpu_custom_call.1} parent=11 // pred_fallthru
          _
        // Predicated region
        $region33: #{tpu_custom_call.1} parent=11 // pred_check
          %p224 = pneg %p168
        $region34: #{tpu_custom_call.1} parent=11 // pred_check_branch
          %226 = sbr.rel (%p224) target = $region36
        $region35: #{tpu_custom_call.1} parent=11 // pred_region
          _
        $region36: #{tpu_custom_call.1} parent=11 // pred_fallthru
          _
      $region12: #{tpu_custom_call.1} parent=5 // pred_fallthru
        _
      %p227 = scmp.lt.s32.totalorder %s16, 2
      // Predicated region
      $region37: #{tpu_custom_call.1} parent=5 // pred_check
        %p228 = pneg %p227
      $region38: #{tpu_custom_call.1} parent=5 // pred_check_branch
        %230 = sbr.rel (%p228) target = $region40
      $region39: #{tpu_custom_call.1} parent=5 // pred_region
        // Predicated region
        $region41: #{tpu_custom_call.1} parent=39 // pred_check
          %p231 = pneg %p36
        $region42: #{tpu_custom_call.1} parent=39 // pred_check_branch
          %233 = sbr.rel (%p231) target = $region44
        $region43: #{tpu_custom_call.1} parent=39 // pred_region
          %p234 = scmp.lt.s32.totalorder %s16, 1
          %s235 = scalar_select %p234, %s16, 1
          %s236 = smul.addr %s235, 2
          %s237 = scalar_lea.vmem %s0, %s236
        $region44: #{tpu_custom_call.1} parent=39 // pred_fallthru
          _
      $region40: #{tpu_custom_call.1} parent=5 // pred_fallthru
        _
      %p238 = scmp.le.s32.totalorder 1, %s16
      %p239 = scmp.lt.s32.totalorder %s16, 3
      %p240 = pnand %p238, %p239
      %p241 = pneg %p240
      // Predicated region
      $region45: #{tpu_custom_call.1} parent=5 // pred_check
        _
      $region46: #{tpu_custom_call.1} parent=5 // pred_check_branch
        %243 = sbr.rel (%p240) target = $region48
      $region47: #{tpu_custom_call.1} parent=5 // pred_region
        %s244 = ssub.s32 %s16, 1
        %p245 = scmp.lt.s32.totalorder %s21, 1
        %s246 = scalar_select %p245, %s21, 1
        %s247 = smul.addr %s246, 2
        %s248 = scalar_lea.vmem %s0, %s247
        %p249 = pneg %p42
        %p250 = pneg %p39
        %p251 = pneg %p63
        %p252 = pneg %p60
        %p253 = pneg %p84
        %p254 = pneg %p81
        %p255 = pneg %p105
        %p256 = pneg %p102
        %p257 = pneg %p126
        %p258 = pneg %p123
        %p259 = pneg %p147
        %p260 = pneg %p144
        %p261 = pneg %p168
        %p262 = pneg %p165
        %p263 = pneg %p194
        %p264 = pneg %p191
        %s265 = sand.u32 %s181, 1
        %s266 = scalar_lea.sflag [#allocation3], %s265
        %s267 = sand.u32 %s181, 1
        %s268 = smul.addr %s267, 4
        %s269 = scalar_lea.vmem [#allocation2], %s268
        %p270 = scmp.lt.s32.totalorder %s21, 1
        %s271 = scalar_select %p270, %s21, 1
        %s272 = smul.addr %s271, 2
        %s273 = scalar_lea.vmem %s0, %s272
        %v274 = vld [vmem:[%s273] sm:$0x3]
        %v275 = vld [vmem:[%s1] sm:$0xff]
        %v276 = vld [vmem:[%s1 + $0x8] sm:$0xff]
        %v277 = vld [vmem:[%s1 + $0x10] sm:$0xff]
        %v278 = vld [vmem:[%s1 + $0x18] sm:$0xff]
        %v279 = vld [vmem:[%s2] sm:$0xff]
        %v280 = vld [vmem:[%s2 + $0x8] sm:$0xff]
        %v281 = vld [vmem:[%s2 + $0x10] sm:$0xff]
        %v282 = vld [vmem:[%s2 + $0x18] sm:$0xff]
        %284 = vset.pattern.permute.xlu0 0
        %285 = vperm.xlu0 %284, %v279
        %v286 = vpop.permute.xlu0 %285
        %289 = vset.pattern.permute.xlu0 0
        %290 = vperm.xlu0 %289, %v280
        %v291 = vpop.permute.xlu0 %290
        %294 = vset.pattern.permute.xlu0 0
        %295 = vperm.xlu0 %294, %v281
        %v296 = vpop.permute.xlu0 %295
        %299 = vset.pattern.permute.xlu0 0
        %300 = vperm.xlu0 %299, %v282
        %v301 = vpop.permute.xlu0 %300
        %vm303 = vcmask 15360
        %v305 = vsel %vm303, %v275, 0
        %v308 = vsel %vm303, %v276, 0
        %v311 = vsel %vm303, %v277, 0
        %v314 = vsel %vm303, %v278, 0
        %vm316 = vcmask 1041408
        %v318 = vsel %vm316, %v274, 0
        %320 = vmatprep.subr.mxu0 0.0
        %321 = vmatpush1.msra.mxu0 %v318
        %322 = vmatprep.subr.mxu0 0.0
        %323 = vmatpush1.msra.mxu0 0.0
        %324 = vmatprep.subr.mxu0 0.0
        %325 = vmatpush1.msra.mxu0 0.0
        %326 = vmatprep.subr.mxu0 0.0
        %327 = vmatpush1.msra.mxu0 0.0
        %328 = vmatprep.subr.mxu0 0.0
        %329 = vmatpush1.msra.mxu0 0.0
        %330 = vmatprep.subr.mxu0 0.0
        %331 = vmatpush1.msra.mxu0 0.0
        %332 = vmatprep.subr.mxu0 0.0
        %333 = vmatpush1.msra.mxu0 0.0
        %334 = vmatprep.subr.mxu0 0.0
        %335 = vmatpush1.msra.mxu0 0.0
        %336 = vmatprep.subr.mxu0 0.0
        %337 = vmatpush1.msra.mxu0 0.0
        %338 = vmatprep.subr.mxu0 0.0
        %339 = vmatpush1.msra.mxu0 0.0
        %340 = vmatprep.subr.mxu0 0.0
        %341 = vmatpush1.msra.mxu0 0.0
        %342 = vmatprep.subr.mxu0 0.0
        %343 = vmatpush1.msra.mxu0 0.0
        %344 = vmatprep.subr.mxu0 0.0
        %345 = vmatpush1.msra.mxu0 0.0
        %346 = vmatprep.subr.mxu0 0.0
        %347 = vmatpush1.msra.mxu0 0.0
        %348 = vmatprep.subr.mxu0 0.0
        %349 = vmatpush1.msra.mxu0 0.0
        %350 = vmatprep.subr.mxu0 0.0
        %351 = vmatpush1.msra.mxu0 0.0
        %352 = vmatprep.subr.mxu0 0.0
        %353 = vmatpush1.msra.mxu0 0.0
        %354 = vmatprep.subr.mxu0 0.0
        %355 = vmatpush1.msra.mxu0 0.0
        %356 = vmatprep.subr.mxu0 0.0
        %357 = vmatpush1.msra.mxu0 0.0
        %358 = vmatprep.subr.mxu0 0.0
        %359 = vmatpush1.msra.mxu0 0.0
        %360 = vmatprep.subr.mxu0 0.0
        %361 = vmatpush1.msra.mxu0 0.0
        %362 = vmatprep.subr.mxu0 0.0
        %363 = vmatpush1.msra.mxu0 0.0
        %364 = vmatprep.subr.mxu0 0.0
        %365 = vmatpush1.msra.mxu0 0.0
        %366 = vmatprep.subr.mxu0 0.0
        %367 = vmatpush1.msra.mxu0 0.0
        %368 = vmatprep.subr.mxu0 0.0
        %369 = vmatpush1.msra.mxu0 0.0
        %370 = vmatprep.subr.mxu0 0.0
        %371 = vmatpush1.msra.mxu0 0.0
        %372 = vmatprep.subr.mxu0 0.0
        %373 = vmatpush1.msra.mxu0 0.0
        %374 = vmatprep.subr.mxu0 0.0
        %375 = vmatpush1.msra.mxu0 0.0
        %376 = vmatprep.subr.mxu0 0.0
        %377 = vmatpush1.msra.mxu0 0.0
        %378 = vmatprep.subr.mxu0 0.0
        %379 = vmatpush1.msra.mxu0 0.0
        %380 = vmatprep.subr.mxu0 0.0
        %381 = vmatpush1.msra.mxu0 0.0
        %382 = vmatprep.subr.mxu0 0.0
        %383 = vmatpush1.msra.mxu0 0.0
        %384 = vmatprep.mubr.f32.mxu0 0.0
        %385 = vmatmul.mubr.f32.gmra.mrb[0].mxu0 %v305
        %v386 = vpop.f32.mrb[0].mxu0
        %v387 = vadd.f32 %v286, %v386
        %v388 = vpop.f32.mrb[0].mxu0
        %389 = vmatprep.mubr.f32.mxu0 0.0
        %390 = vmatmul.mubr.f32.gmra.mrb[0].mxu0 %v308
        %v391 = vpop.f32.mrb[0].mxu0
        %v392 = vadd.f32 %v291, %v391
        %v393 = vpop.f32.mrb[0].mxu0
        %394 = vmatprep.mubr.f32.mxu0 0.0
        %395 = vmatmul.mubr.f32.gmra.mrb[0].mxu0 %v311
        %v396 = vpop.f32.mrb[0].mxu0
        %v397 = vadd.f32 %v296, %v396
        %v398 = vpop.f32.mrb[0].mxu0
        %399 = vmatprep.mubr.f32.mxu0 0.0
        %400 = vmatmul.mubr.f32.gmra.mrb[0].mxu0 %v314
        %v401 = vpop.f32.mrb[0].mxu0
        %v402 = vadd.f32 %v301, %v401
        %v403 = vpop.f32.mrb[0].mxu0
        %404 = vdwg.mxu0
        %v405 = vmul.f32 %v387, 0.31830987
        %v406 = vmul.f32 %v392, 0.31830987
        %v407 = vmul.f32 %v397, 0.31830987
        %v408 = vmul.f32 %v402, 0.31830987
        %v409 = vadd.f32 %v405, 0.5
        %v410 = vadd.f32 %v406, 0.5
        %v411 = vadd.f32 %v407, 0.5
        %v412 = vadd.f32 %v408, 0.5
        %v413 = vfloor.f32 %v409
        %v414 = vfloor.f32 %v410
        %v415 = vfloor.f32 %v411
        %v416 = vfloor.f32 %v412
        %v417 = vmul.f32 %v413, 3.140625
        %v418 = vmul.f32 %v414, 3.140625
        %v419 = vmul.f32 %v415, 3.140625
        %v420 = vmul.f32 %v416, 3.140625
        %v421 = vsub.f32 %v387, %v417
        %v422 = vsub.f32 %v392, %v418
        %v423 = vsub.f32 %v397, %v419
        %v424 = vsub.f32 %v402, %v420
        %v425 = vmul.f32 %v413, 0.0009676536
        %v426 = vmul.f32 %v414, 0.0009676536
        %v427 = vmul.f32 %v415, 0.0009676536
        %v428 = vmul.f32 %v416, 0.0009676536
        %v429 = vsub.f32 %v421, %v425
        %v430 = vsub.f32 %v422, %v426
        %v431 = vsub.f32 %v423, %v427
        %v432 = vsub.f32 %v424, %v428
        %v433 = vmul.f32 %v429, %v429
        %v434 = vmul.f32 %v430, %v430
        %v435 = vmul.f32 %v431, %v431
        %v436 = vmul.f32 %v432, %v432
        %v437 = vmul.f32 %v433, -2.5052108e-08
        %v438 = vmul.f32 %v434, -2.5052108e-08
        %v439 = vmul.f32 %v435, -2.5052108e-08
        %v440 = vmul.f32 %v436, -2.5052108e-08
        %v441 = vadd.f32 %v437, 2.7557319e-06
        %v442 = vadd.f32 %v438, 2.7557319e-06
        %v443 = vadd.f32 %v439, 2.7557319e-06
        %v444 = vadd.f32 %v440, 2.7557319e-06
        %v445 = vmul.f32 %v441, %v433
        %v446 = vmul.f32 %v442, %v434
        %v447 = vmul.f32 %v443, %v435
        %v448 = vmul.f32 %v444, %v436
        %v449 = vadd.f32 %v445, -0.0001984127
        %v450 = vadd.f32 %v446, -0.0001984127
        %v451 = vadd.f32 %v447, -0.0001984127
        %v452 = vadd.f32 %v448, -0.0001984127
        %v453 = vmul.f32 %v449, %v433
        %v454 = vmul.f32 %v450, %v434
        %v455 = vmul.f32 %v451, %v435
        %v456 = vmul.f32 %v452, %v436
        %v457 = vadd.f32 %v453, 0.008333334
        %v458 = vadd.f32 %v454, 0.008333334
        %v459 = vadd.f32 %v455, 0.008333334
        %v460 = vadd.f32 %v456, 0.008333334
        %v461 = vmul.f32 %v457, %v433
        %v462 = vmul.f32 %v458, %v434
        %v463 = vmul.f32 %v459, %v435
        %v464 = vmul.f32 %v460, %v436
        %v465 = vadd.f32 %v461, -0.16666667
        %v466 = vadd.f32 %v462, -0.16666667
        %v467 = vadd.f32 %v463, -0.16666667
        %v468 = vadd.f32 %v464, -0.16666667
        %v469 = vmul.f32 %v465, %v433
        %v470 = vmul.f32 %v466, %v434
        %v471 = vmul.f32 %v467, %v435
        %v472 = vmul.f32 %v468, %v436
        %v473 = vadd.f32 %v469, 1.0
        %v474 = vadd.f32 %v470, 1.0
        %v475 = vadd.f32 %v471, 1.0
        %v476 = vadd.f32 %v472, 1.0
        %v477 = vmul.f32 %v473, %v429
        %v478 = vmul.f32 %v474, %v430
        %v479 = vmul.f32 %v475, %v431
        %v480 = vmul.f32 %v476, %v432
        %v481 = vcvt.f32.s32.to.zero.pseudo %v413
        %v482 = vcvt.f32.s32.to.zero.pseudo %v414
        %v483 = vcvt.f32.s32.to.zero.pseudo %v415
        %v484 = vcvt.f32.s32.to.zero.pseudo %v416
        %v485 = vand.u32 %v481, 1
        %v486 = vand.u32 %v482, 1
        %v487 = vand.u32 %v483, 1
        %v488 = vand.u32 %v484, 1
        %vm489 = vcmp.ne.s32.totalorder %v485, 0
        %vm490 = vcmp.ne.s32.totalorder %v486, 0
        %vm491 = vcmp.ne.s32.totalorder %v487, 0
        %vm492 = vcmp.ne.s32.totalorder %v488, 0
        %v493 = vsub.f32 0.0, %v477
        %v494 = vsub.f32 0.0, %v478
        %v495 = vsub.f32 0.0, %v479
        %v496 = vsub.f32 0.0, %v480
        %v497 = vsel %vm489, %v493, %v477
        %v498 = vsel %vm490, %v494, %v478
        %v499 = vsel %vm491, %v495, %v479
        %v500 = vsel %vm492, %v496, %v480
        %v501 = vld [vmem:[%s3] sm:$0xff]
        %v502 = vld [vmem:[%s3 + $0x8] sm:$0xff]
        %v503 = vld [vmem:[%s3 + $0x10] sm:$0xff]
        %v504 = vld [vmem:[%s3 + $0x18] sm:$0xff]
        %v505 = vld [vmem:[%s4] sm:$0xff]
        %v506 = vld [vmem:[%s4 + $0x8] sm:$0xff]
        %v507 = vld [vmem:[%s4 + $0x10] sm:$0xff]
        %v508 = vld [vmem:[%s4 + $0x18] sm:$0xff]
        %510 = vset.pattern.permute.xlu0 0
        %511 = vperm.xlu0 %510, %v505
        %v512 = vpop.permute.xlu0 %511
        %515 = vset.pattern.permute.xlu0 0
        %516 = vperm.xlu0 %515, %v506
        %v517 = vpop.permute.xlu0 %516
        %520 = vset.pattern.permute.xlu0 0
        %521 = vperm.xlu0 %520, %v507
        %v522 = vpop.permute.xlu0 %521
        %525 = vset.pattern.permute.xlu0 0
        %526 = vperm.xlu0 %525, %v508
        %v527 = vpop.permute.xlu0 %526
        %vm529 = vcmask 261120
        %v531 = vsel %vm529, %v501, 0
        %v534 = vsel %vm529, %v502, 0
        %v537 = vsel %vm529, %v503, 0
        %v540 = vsel %vm529, %v504, 0
        %542 = vmatprep.subr.mxu0 0.0
        %543 = vmatpush1.msra.mxu0 %v497
        %544 = vmatprep.subr.mxu0 0.0
        %545 = vmatpush1.msra.mxu0 %v498
        %546 = vmatprep.subr.mxu0 0.0
        %547 = vmatpush1.msra.mxu0 %v499
        %548 = vmatprep.subr.mxu0 0.0
        %549 = vmatpush1.msra.mxu0 %v500
        %550 = vmatprep.subr.mxu0 0.0
        %551 = vmatpush1.msra.mxu0 0.0
        %552 = vmatprep.subr.mxu0 0.0
        %553 = vmatpush1.msra.mxu0 0.0
        %554 = vmatprep.subr.mxu0 0.0
        %555 = vmatpush1.msra.mxu0 0.0
        %556 = vmatprep.subr.mxu0 0.0
        %557 = vmatpush1.msra.mxu0 0.0
        %558 = vmatprep.subr.mxu0 0.0
        %559 = vmatpush1.msra.mxu0 0.0
        %560 = vmatprep.subr.mxu0 0.0
        %561 = vmatpush1.msra.mxu0 0.0
        %562 = vmatprep.subr.mxu0 0.0
        %563 = vmatpush1.msra.mxu0 0.0
        %564 = vmatprep.subr.mxu0 0.0
        %565 = vmatpush1.msra.mxu0 0.0
        %566 = vmatprep.subr.mxu0 0.0
        %567 = vmatpush1.msra.mxu0 0.0
        %568 = vmatprep.subr.mxu0 0.0
        %569 = vmatpush1.msra.mxu0 0.0
        %570 = vmatprep.subr.mxu0 0.0
        %571 = vmatpush1.msra.mxu0 0.0
        %572 = vmatprep.subr.mxu0 0.0
        %573 = vmatpush1.msra.mxu0 0.0
        %574 = vmatprep.subr.mxu0 0.0
        %575 = vmatpush1.msra.mxu0 0.0
        %576 = vmatprep.subr.mxu0 0.0
        %577 = vmatpush1.msra.mxu0 0.0
        %578 = vmatprep.subr.mxu0 0.0
        %579 = vmatpush1.msra.mxu0 0.0
        %580 = vmatprep.subr.mxu0 0.0
        %581 = vmatpush1.msra.mxu0 0.0
        %582 = vmatprep.subr.mxu0 0.0
        %583 = vmatpush1.msra.mxu0 0.0
        %584 = vmatprep.subr.mxu0 0.0
        %585 = vmatpush1.msra.mxu0 0.0
        %586 = vmatprep.subr.mxu0 0.0
        %587 = vmatpush1.msra.mxu0 0.0
        %588 = vmatprep.subr.mxu0 0.0
        %589 = vmatpush1.msra.mxu0 0.0
        %590 = vmatprep.subr.mxu0 0.0
        %591 = vmatpush1.msra.mxu0 0.0
        %592 = vmatprep.subr.mxu0 0.0
        %593 = vmatpush1.msra.mxu0 0.0
        %594 = vmatprep.subr.mxu0 0.0
        %595 = vmatpush1.msra.mxu0 0.0
        %596 = vmatprep.subr.mxu0 0.0
        %597 = vmatpush1.msra.mxu0 0.0
        %598 = vmatprep.subr.mxu0 0.0
        %599 = vmatpush1.msra.mxu0 0.0
        %600 = vmatprep.subr.mxu0 0.0
        %601 = vmatpush1.msra.mxu0 0.0
        %602 = vmatprep.subr.mxu0 0.0
        %603 = vmatpush1.msra.mxu0 0.0
        %604 = vmatprep.subr.mxu0 0.0
        %605 = vmatpush1.msra.mxu0 0.0
        %606 = vmatprep.mubr.f32.mxu0 0.0
        %607 = vmatmul.mubr.f32.gmra.mrb[0].mxu0 %v531
        %v608 = vpop.f32.mrb[0].mxu0
        %v609 = vadd.f32 %v512, %v608
        %v610 = vpop.f32.mrb[0].mxu0
        %611 = vmatprep.mubr.f32.mxu0 0.0
        %612 = vmatmul.mubr.f32.gmra.mrb[0].mxu0 %v534
        %v613 = vpop.f32.mrb[0].mxu0
        %v614 = vadd.f32 %v517, %v613
        %v615 = vpop.f32.mrb[0].mxu0
        %616 = vmatprep.mubr.f32.mxu0 0.0
        %617 = vmatmul.mubr.f32.gmra.mrb[0].mxu0 %v537
        %v618 = vpop.f32.mrb[0].mxu0
        %v619 = vadd.f32 %v522, %v618
        %v620 = vpop.f32.mrb[0].mxu0
        %621 = vmatprep.mubr.f32.mxu0 0.0
        %622 = vmatmul.mubr.f32.gmra.mrb[0].mxu0 %v540
        %v623 = vpop.f32.mrb[0].mxu0
        %v624 = vadd.f32 %v527, %v623
        %v625 = vpop.f32.mrb[0].mxu0
        %626 = vdwg.mxu0
        %v627 = vmul.f32 %v609, 0.31830987
        %v628 = vmul.f32 %v614, 0.31830987
        %v629 = vmul.f32 %v619, 0.31830987
        %v630 = vmul.f32 %v624, 0.31830987
        %v631 = vadd.f32 %v627, 0.5
        %v632 = vadd.f32 %v628, 0.5
        %v633 = vadd.f32 %v629, 0.5
        %v634 = vadd.f32 %v630, 0.5
        %v635 = vfloor.f32 %v631
        %v636 = vfloor.f32 %v632
        %v637 = vfloor.f32 %v633
        %v638 = vfloor.f32 %v634
        %v639 = vmul.f32 %v635, 3.140625
        %v640 = vmul.f32 %v636, 3.140625
        %v641 = vmul.f32 %v637, 3.140625
        %v642 = vmul.f32 %v638, 3.140625
        %v643 = vsub.f32 %v609, %v639
        %v644 = vsub.f32 %v614, %v640
        %v645 = vsub.f32 %v619, %v641
        %v646 = vsub.f32 %v624, %v642
        %v647 = vmul.f32 %v635, 0.0009676536
        %v648 = vmul.f32 %v636, 0.0009676536
        %v649 = vmul.f32 %v637, 0.0009676536
        %v650 = vmul.f32 %v638, 0.0009676536
        %v651 = vsub.f32 %v643, %v647
        %v652 = vsub.f32 %v644, %v648
        %v653 = vsub.f32 %v645, %v649
        %v654 = vsub.f32 %v646, %v650
        %v655 = vmul.f32 %v651, %v651
        %v656 = vmul.f32 %v652, %v652
        %v657 = vmul.f32 %v653, %v653
        %v658 = vmul.f32 %v654, %v654
        %v659 = vmul.f32 %v655, -2.5052108e-08
        %v660 = vmul.f32 %v656, -2.5052108e-08
        %v661 = vmul.f32 %v657, -2.5052108e-08
        %v662 = vmul.f32 %v658, -2.5052108e-08
        %v663 = vadd.f32 %v659, 2.7557319e-06
        %v664 = vadd.f32 %v660, 2.7557319e-06
        %v665 = vadd.f32 %v661, 2.7557319e-06
        %v666 = vadd.f32 %v662, 2.7557319e-06
        %v667 = vmul.f32 %v663, %v655
        %v668 = vmul.f32 %v664, %v656
        %v669 = vmul.f32 %v665, %v657
        %v670 = vmul.f32 %v666, %v658
        %v671 = vadd.f32 %v667, -0.0001984127
        %v672 = vadd.f32 %v668, -0.0001984127
        %v673 = vadd.f32 %v669, -0.0001984127
        %v674 = vadd.f32 %v670, -0.0001984127
        %v675 = vmul.f32 %v671, %v655
        %v676 = vmul.f32 %v672, %v656
        %v677 = vmul.f32 %v673, %v657
        %v678 = vmul.f32 %v674, %v658
        %v679 = vadd.f32 %v675, 0.008333334
        %v680 = vadd.f32 %v676, 0.008333334
        %v681 = vadd.f32 %v677, 0.008333334
        %v682 = vadd.f32 %v678, 0.008333334
        %v683 = vmul.f32 %v679, %v655
        %v684 = vmul.f32 %v680, %v656
        %v685 = vmul.f32 %v681, %v657
        %v686 = vmul.f32 %v682, %v658
        %v687 = vadd.f32 %v683, -0.16666667
        %v688 = vadd.f32 %v684, -0.16666667
        %v689 = vadd.f32 %v685, -0.16666667
        %v690 = vadd.f32 %v686, -0.16666667
        %v691 = vmul.f32 %v687, %v655
        %v692 = vmul.f32 %v688, %v656
        %v693 = vmul.f32 %v689, %v657
        %v694 = vmul.f32 %v690, %v658
        %v695 = vadd.f32 %v691, 1.0
        %v696 = vadd.f32 %v692, 1.0
        %v697 = vadd.f32 %v693, 1.0
        %v698 = vadd.f32 %v694, 1.0
        %v699 = vmul.f32 %v695, %v651
        %v700 = vmul.f32 %v696, %v652
        %v701 = vmul.f32 %v697, %v653
        %v702 = vmul.f32 %v698, %v654
        %v703 = vcvt.f32.s32.to.zero.pseudo %v635
        %v704 = vcvt.f32.s32.to.zero.pseudo %v636
        %v705 = vcvt.f32.s32.to.zero.pseudo %v637
        %v706 = vcvt.f32.s32.to.zero.pseudo %v638
        %v707 = vand.u32 %v703, 1
        %v708 = vand.u32 %v704, 1
        %v709 = vand.u32 %v705, 1
        %v710 = vand.u32 %v706, 1
        %vm711 = vcmp.ne.s32.totalorder %v707, 0
        %vm712 = vcmp.ne.s32.totalorder %v708, 0
        %vm713 = vcmp.ne.s32.totalorder %v709, 0
        %vm714 = vcmp.ne.s32.totalorder %v710, 0
        %v715 = vsub.f32 0.0, %v699
        %v716 = vsub.f32 0.0, %v700
        %v717 = vsub.f32 0.0, %v701
        %v718 = vsub.f32 0.0, %v702
        %v719 = vsel %vm711, %v715, %v699
        %v720 = vsel %vm712, %v716, %v700
        %v721 = vsel %vm713, %v717, %v701
        %v722 = vsel %vm714, %v718, %v702
        %v723 = vld [vmem:[%s5] sm:$0x7]
        %v724 = vld [vmem:[%s6] sm:$0x7]
        %726 = vset.pattern.permute.xlu0 0
        %727 = vperm.xlu0 %726, %v724
        %v728 = vpop.permute.xlu0 %727
        %v731 = vsel %vm529, %v723, 0
        %733 = vmatprep.subr.mxu0 0.0
        %734 = vmatpush1.msra.mxu0 %v719
        %735 = vmatprep.subr.mxu0 0.0
        %736 = vmatpush1.msra.mxu0 %v720
        %737 = vmatprep.subr.mxu0 0.0
        %738 = vmatpush1.msra.mxu0 %v721
        %739 = vmatprep.subr.mxu0 0.0
        %740 = vmatpush1.msra.mxu0 %v722
        %741 = vmatprep.subr.mxu0 0.0
        %742 = vmatpush1.msra.mxu0 0.0
        %743 = vmatprep.subr.mxu0 0.0
        %744 = vmatpush1.msra.mxu0 0.0
        %745 = vmatprep.subr.mxu0 0.0
        %746 = vmatpush1.msra.mxu0 0.0
        %747 = vmatprep.subr.mxu0 0.0
        %748 = vmatpush1.msra.mxu0 0.0
        %749 = vmatprep.subr.mxu0 0.0
        %750 = vmatpush1.msra.mxu0 0.0
        %751 = vmatprep.subr.mxu0 0.0
        %752 = vmatpush1.msra.mxu0 0.0
        %753 = vmatprep.subr.mxu0 0.0
        %754 = vmatpush1.msra.mxu0 0.0
        %755 = vmatprep.subr.mxu0 0.0
        %756 = vmatpush1.msra.mxu0 0.0
        %757 = vmatprep.subr.mxu0 0.0
        %758 = vmatpush1.msra.mxu0 0.0
        %759 = vmatprep.subr.mxu0 0.0
        %760 = vmatpush1.msra.mxu0 0.0
        %761 = vmatprep.subr.mxu0 0.0
        %762 = vmatpush1.msra.mxu0 0.0
        %763 = vmatprep.subr.mxu0 0.0
        %764 = vmatpush1.msra.mxu0 0.0
        %765 = vmatprep.subr.mxu0 0.0
        %766 = vmatpush1.msra.mxu0 0.0
        %767 = vmatprep.subr.mxu0 0.0
        %768 = vmatpush1.msra.mxu0 0.0
        %769 = vmatprep.subr.mxu0 0.0
        %770 = vmatpush1.msra.mxu0 0.0
        %771 = vmatprep.subr.mxu0 0.0
        %772 = vmatpush1.msra.mxu0 0.0
        %773 = vmatprep.subr.mxu0 0.0
        %774 = vmatpush1.msra.mxu0 0.0
        %775 = vmatprep.subr.mxu0 0.0
        %776 = vmatpush1.msra.mxu0 0.0
        %777 = vmatprep.subr.mxu0 0.0
        %778 = vmatpush1.msra.mxu0 0.0
        %779 = vmatprep.subr.mxu0 0.0
        %780 = vmatpush1.msra.mxu0 0.0
        %781 = vmatprep.subr.mxu0 0.0
        %782 = vmatpush1.msra.mxu0 0.0
        %783 = vmatprep.subr.mxu0 0.0
        %784 = vmatpush1.msra.mxu0 0.0
        %785 = vmatprep.subr.mxu0 0.0
        %786 = vmatpush1.msra.mxu0 0.0
        %787 = vmatprep.subr.mxu0 0.0
        %788 = vmatpush1.msra.mxu0 0.0
        %789 = vmatprep.subr.mxu0 0.0
        %790 = vmatpush1.msra.mxu0 0.0
        %791 = vmatprep.subr.mxu0 0.0
        %792 = vmatpush1.msra.mxu0 0.0
        %793 = vmatprep.subr.mxu0 0.0
        %794 = vmatpush1.msra.mxu0 0.0
        %795 = vmatprep.subr.mxu0 0.0
        %796 = vmatpush1.msra.mxu0 0.0
        %797 = vmatprep.mubr.f32.mxu0 0.0
        %798 = vmatmul.mubr.f32.gmra.mrb[0].mxu0 %v731
        %v799 = vpop.f32.mrb[0].mxu0
        %v800 = vadd.f32 %v728, %v799
        %v801 = vpop.f32.mrb[0].mxu0
        %802 = vdwg.mxu0
        %803 = vst [vmem:[%s269] sm:$0x7] %v800
        %s804 = sand.u32 %s181, 1
        %s805 = scalar_lea.sflag [#allocation3], %s804
        %s806 = sand.u32 %s181, 1
        %s807 = smul.addr %s806, 4
        %s808 = scalar_lea.vmem [#allocation2], %s807
        // Predicated region
        $region49: #{tpu_custom_call.1} parent=47 // pred_check
          %p809 = pneg %p191
        $region50: #{tpu_custom_call.1} parent=47 // pred_check_branch
          %811 = sbr.rel (%p809) target = $region52
        $region51: #{tpu_custom_call.1} parent=47 // pred_region
          %s813 = ssub.s32 64, 64
          %814 = vsyncadd %s805, %s813
          %s815 = smul.addr %s21, 64
          %s816 = scalar_lea.hbm %s7, %s815
          %s818 = sshll.u32 %s808, 4
          %s819 = int_to_ptr.vmem [resolvable:$true] %s818
          %821 = dma.vmem_to_hbm [thread:$0]  %s819, 64, %s816, %s805
        $region52: #{tpu_custom_call.1} parent=47 // pred_fallthru
          _
      $region48: #{tpu_custom_call.1} parent=5 // pred_fallthru
        _
      %p822 = scmp.le.s32.totalorder 2, %s16
      // Predicated region
      $region53: #{tpu_custom_call.1} parent=5 // pred_check
        %p823 = pneg %p822
      $region54: #{tpu_custom_call.1} parent=5 // pred_check_branch
        %825 = sbr.rel (%p823) target = $region56
      $region55: #{tpu_custom_call.1} parent=5 // pred_region
        %s826 = ssub.s32 %s16, 2
        // Predicated region
        $region57: #{tpu_custom_call.1} parent=55 // pred_check
          %p827 = pneg %p197
        $region58: #{tpu_custom_call.1} parent=55 // pred_check_branch
          %829 = sbr.rel (%p827) target = $region60
        $region59: #{tpu_custom_call.1} parent=55 // pred_region
          %s830 = sand.u32 %s182, 1
          %s831 = scalar_lea.sflag [#allocation3], %s830
          %s832 = sand.u32 %s182, 1
          %s833 = smul.addr %s832, 4
          %s834 = scalar_lea.vmem [#allocation2], %s833
          %835 = dma.done %s831, 64
        $region60: #{tpu_custom_call.1} parent=55 // pred_fallthru
          _
      $region56: #{tpu_custom_call.1} parent=5 // pred_fallthru
        _
    $region6: #{tpu_custom_call.1} parent=1 // loop_footer
      %s20 = sadd.s32 1, %s16
    $region7: #{tpu_custom_call.1} parent=1 // loop_footer_branch
      %15 = sbr.rel target = $region3
    $region8: #{tpu_custom_call.1} parent=1 // loop_exit
      _
    %836 = vsyncpa [#allocation3], 1
    %s837 = scalar_lea.sflag [#allocation3], 1
    %838 = vsyncpa %s837, 1

// kernel: tpu_custom_call.1
$region0: #{tpu_custom_call.1}
  #allocation0 [shape = 'u32[]', space=smem, size = 0x4, offset = 0x4, fixed_abs, tag = 'smem constant byte address 0x4 - core index']
  #allocation1 [shape = 'u32[144,128]{1,0:T(1,128)}', space=vmem, size = 0x12000, scoped, tag = 'internal scratch']
  %s0 = inlined_call_operand.vmem [shape: f32[2,256], index: 0, kind: input, shape index: {}]
  %s1 = inlined_call_operand.vmem [shape: f32[32,2], index: 1, kind: input, shape index: {}]
  %s2 = inlined_call_operand.vmem [shape: f32[32,1], index: 2, kind: input, shape index: {}]
  %s3 = inlined_call_operand.vmem [shape: f32[32,32], index: 3, kind: input, shape index: {}]
  %s4 = inlined_call_operand.vmem [shape: f32[32,1], index: 4, kind: input, shape index: {}]
  %s5 = inlined_call_operand.vmem [shape: f32[3,32], index: 5, kind: input, shape index: {}]
  %s6 = inlined_call_operand.vmem [shape: f32[3,1], index: 6, kind: input, shape index: {}]
  %s7 = inlined_call_operand.hbm [shape: f32[3,256], index: 7, kind: output, shape index: {}]
  %s8 = sld [smem:[#allocation0]]
  $region61: #{tpu_custom_call.1} parent=0
    _
  %s10 = ssub.s32 1, %s8
  %s11 = scalar_select 0, %s10, %s8
  $region1: #{tpu_custom_call.1} parent=0
    #allocation2 [shape = 'u8[4096]{0}', space=vmem, size = 0x1000, scoped, tag = 'output window, operand 0']
    #allocation3 [shape = 's32[2]{0}', space=sflag, size = 0x8, scoped, tag = 'scoped memory for tpu_custom_call.1']
    %12 = vsyncpa [#allocation3], 0
    %s13 = scalar_lea.sflag [#allocation3], 1
    %14 = vsyncpa %s13, 0
    loop: start=0, step=1, limit=4
    $region2: #{tpu_custom_call.1} parent=1 // loop_pre_header
      _
    $region3: #{tpu_custom_call.1} parent=1 // loop_header
      %s16 = sphi 0, %s20
      %p17 = scmp.ge.s32.totalorder %s16, 4
      %s26 = sphi 0, %s28
      %s29 = sphi 0, %s26
      %s30 = sphi 0, %s29
      %s46 = sphi 0, %s30
      %s50 = sphi 0, %s50
      %s52 = sphi 0, %s50
      %s53 = sphi 0, %s52
      %s67 = sphi 0, %s53
      %s71 = sphi 0, %s71
      %s73 = sphi 0, %s71
      %s74 = sphi 0, %s73
      %s88 = sphi 0, %s74
      %s92 = sphi 0, %s92
      %s94 = sphi 0, %s92
      %s95 = sphi 0, %s94
      %s109 = sphi 0, %s95
      %s113 = sphi 0, %s113
      %s115 = sphi 0, %s113
      %s116 = sphi 0, %s115
      %s130 = sphi 0, %s116
      %s134 = sphi 0, %s134
      %s136 = sphi 0, %s134
      %s137 = sphi 0, %s136
      %s151 = sphi 0, %s137
      %s155 = sphi 0, %s155
      %s157 = sphi 0, %s155
      %s158 = sphi 0, %s157
      %s172 = sphi 0, %s158
      %s178 = sphi 0, %s180
      %s181 = sphi 0, %s178
      %s182 = sphi 0, %s181
      %s198 = sphi 0, %s182
    $region4: #{tpu_custom_call.1} parent=1 // loop_header_branch
      %19 = sbr.rel (%p17) target = $region8
    $region5: #{tpu_custom_call.1} parent=1 // loop_body
      %s21 = ssub.s32 %s16, 1
      %s22 = ssub.s32 %s16, 2
      %s23 = sadd.s32 %s16, 1
      %s24 = ssub.s32 %s16, %s23
      %p25 = scmp.eq.s32.totalorder %s24, 0
      %s27 = sadd.s32 %s26, 1
      %s28 = scalar_select %p25, %s26, %s27
      %p31 = pneg %p25
      %p32 = scmp.eq.s32.totalorder %s16, 1
      %p33 = por %p31, %p32
      %p34 = scmp.ne.s32.totalorder %s26, %s29
      %p35 = scmp.eq.s32.totalorder %s16, 0
      %p36 = por %p34, %p35
      %p37 = scmp.ne.s32.totalorder %s26, %s29
      %p38 = scmp.eq.s32.totalorder %s21, 1
      %p39 = por %p37, %p38
      %p40 = scmp.ne.s32.totalorder %s29, %s30
      %p41 = scmp.eq.s32.totalorder %s21, 0
      %p42 = por %p40, %p41
      %p43 = scmp.ne.s32.totalorder %s29, %s30
      %p44 = scmp.eq.s32.totalorder %s22, 1
      %p45 = por %p43, %p44
      %p47 = scmp.ne.s32.totalorder %s30, %s46
      %p48 = scmp.eq.s32.totalorder %s22, 0
      %p49 = por %p47, %p48
      %s51 = sadd.s32 %s50, 1
      %p54 = scmp.eq.s32.totalorder %s16, 1
      %p55 = scmp.ne.s32.totalorder %s50, %s52
      %p56 = scmp.eq.s32.totalorder %s16, 0
      %p57 = por %p55, %p56
      %p58 = scmp.ne.s32.totalorder %s50, %s52
      %p59 = scmp.eq.s32.totalorder %s21, 1
      %p60 = por %p58, %p59
      %p61 = scmp.ne.s32.totalorder %s52, %s53
      %p62 = scmp.eq.s32.totalorder %s21, 0
      %p63 = por %p61, %p62
      %p64 = scmp.ne.s32.totalorder %s52, %s53
      %p65 = scmp.eq.s32.totalorder %s22, 1
      %p66 = por %p64, %p65
      %p68 = scmp.ne.s32.totalorder %s53, %s67
      %p69 = scmp.eq.s32.totalorder %s22, 0
      %p70 = por %p68, %p69
      %s72 = sadd.s32 %s71, 1
      %p75 = scmp.eq.s32.totalorder %s16, 1
      %p76 = scmp.ne.s32.totalorder %s71, %s73
      %p77 = scmp.eq.s32.totalorder %s16, 0
      %p78 = por %p76, %p77
      %p79 = scmp.ne.s32.totalorder %s71, %s73
      %p80 = scmp.eq.s32.totalorder %s21, 1
      %p81 = por %p79, %p80
      %p82 = scmp.ne.s32.totalorder %s73, %s74
      %p83 = scmp.eq.s32.totalorder %s21, 0
      %p84 = por %p82, %p83
      %p85 = scmp.ne.s32.totalorder %s73, %s74
      %p86 = scmp.eq.s32.totalorder %s22, 1
      %p87 = por %p85, %p86
      %p89 = scmp.ne.s32.totalorder %s74, %s88
      %p90 = scmp.eq.s32.totalorder %s22, 0
      %p91 = por %p89, %p90
      %s93 = sadd.s32 %s92, 1
      %p96 = scmp.eq.s32.totalorder %s16, 1
      %p97 = scmp.ne.s32.totalorder %s92, %s94
      %p98 = scmp.eq.s32.totalorder %s16, 0
      %p99 = por %p97, %p98
      %p100 = scmp.ne.s32.totalorder %s92, %s94
      %p101 = scmp.eq.s32.totalorder %s21, 1
      %p102 = por %p100, %p101
      %p103 = scmp.ne.s32.totalorder %s94, %s95
      %p104 = scmp.eq.s32.totalorder %s21, 0
      %p105 = por %p103, %p104
      %p106 = scmp.ne.s32.totalorder %s94, %s95
      %p107 = scmp.eq.s32.totalorder %s22, 1
      %p108 = por %p106, %p107
      %p110 = scmp.ne.s32.totalorder %s95, %s109
      %p111 = scmp.eq.s32.totalorder %s22, 0
      %p112 = por %p110, %p111
      %s114 = sadd.s32 %s113, 1
      %p117 = scmp.eq.s32.totalorder %s16, 1
      %p118 = scmp.ne.s32.totalorder %s113, %s115
      %p119 = scmp.eq.s32.totalorder %s16, 0
      %p120 = por %p118, %p119
      %p121 = scmp.ne.s32.totalorder %s113, %s115
      %p122 = scmp.eq.s32.totalorder %s21, 1
      %p123 = por %p121, %p122
      %p124 = scmp.ne.s32.totalorder %s115, %s116
      %p125 = scmp.eq.s32.totalorder %s21, 0
      %p126 = por %p124, %p125
      %p127 = scmp.ne.s32.totalorder %s115, %s116
      %p128 = scmp.eq.s32.totalorder %s22, 1
      %p129 = por %p127, %p128
      %p131 = scmp.ne.s32.totalorder %s116, %s130
      %p132 = scmp.eq.s32.totalorder %s22, 0
      %p133 = por %p131, %p132
      %s135 = sadd.s32 %s134, 1
      %p138 = scmp.eq.s32.totalorder %s16, 1
      %p139 = scmp.ne.s32.totalorder %s134, %s136
      %p140 = scmp.eq.s32.totalorder %s16, 0
      %p141 = por %p139, %p140
      %p142 = scmp.ne.s32.totalorder %s134, %s136
      %p143 = scmp.eq.s32.totalorder %s21, 1
      %p144 = por %p142, %p143
      %p145 = scmp.ne.s32.totalorder %s136, %s137
      %p146 = scmp.eq.s32.totalorder %s21, 0
      %p147 = por %p145, %p146
      %p148 = scmp.ne.s32.totalorder %s136, %s137
      %p149 = scmp.eq.s32.totalorder %s22, 1
      %p150 = por %p148, %p149
      %p152 = scmp.ne.s32.totalorder %s137, %s151
      %p153 = scmp.eq.s32.totalorder %s22, 0
      %p154 = por %p152, %p153
      %s156 = sadd.s32 %s155, 1
      %p159 = scmp.eq.s32.totalorder %s16, 1
      %p160 = scmp.ne.s32.totalorder %s155, %s157
      %p161 = scmp.eq.s32.totalorder %s16, 0
      %p162 = por %p160, %p161
      %p163 = scmp.ne.s32.totalorder %s155, %s157
      %p164 = scmp.eq.s32.totalorder %s21, 1
      %p165 = por %p163, %p164
      %p166 = scmp.ne.s32.totalorder %s157, %s158
      %p167 = scmp.eq.s32.totalorder %s21, 0
      %p168 = por %p166, %p167
      %p169 = scmp.ne.s32.totalorder %s157, %s158
      %p170 = scmp.eq.s32.totalorder %s22, 1
      %p171 = por %p169, %p170
      %p173 = scmp.ne.s32.totalorder %s158, %s172
      %p174 = scmp.eq.s32.totalorder %s22, 0
      %p175 = por %p173, %p174
      %s176 = ssub.s32 %s16, %s23
      %p177 = scmp.eq.s32.totalorder %s176, 0
      %s179 = sadd.s32 %s178, 1
      %s180 = scalar_select %p177, %s178, %s179
      %p183 = pneg %p177
      %p184 = scmp.eq.s32.totalorder %s16, 1
      %p185 = por %p183, %p184
      %p186 = scmp.ne.s32.totalorder %s178, %s181
      %p187 = scmp.eq.s32.totalorder %s16, 0
      %p188 = por %p186, %p187
      %p189 = scmp.ne.s32.totalorder %s178, %s181
      %p190 = scmp.eq.s32.totalorder %s21, 1
      %p191 = por %p189, %p190
      %p192 = scmp.ne.s32.totalorder %s181, %s182
      %p193 = scmp.eq.s32.totalorder %s21, 0
      %p194 = por %p192, %p193
      %p195 = scmp.ne.s32.totalorder %s181, %s182
      %p196 = scmp.eq.s32.totalorder %s22, 1
      %p197 = por %p195, %p196
      %p199 = scmp.ne.s32.totalorder %s182, %s198
      %p200 = scmp.eq.s32.totalorder %s22, 0
      %p201 = por %p199, %p200
      %p202 = scmp.le.s32.totalorder 1, %s16
      %p203 = scmp.lt.s32.totalorder %s16, 3
      %p204 = pnand %p202, %p203
      %p205 = pneg %p204
      // Predicated region
      $region9: #{tpu_custom_call.1} parent=5 // pred_check
        _
      $region10: #{tpu_custom_call.1} parent=5 // pred_check_branch
        %207 = sbr.rel (%p204) target = $region12
      $region11: #{tpu_custom_call.1} parent=5 // pred_region
        %s208 = ssub.s32 %s16, 1
        // Predicated region
        $region13: #{tpu_custom_call.1} parent=11 // pred_check
          %p209 = pneg %p63
        $region14: #{tpu_custom_call.1} parent=11 // pred_check_branch
          %211 = sbr.rel (%p209) target = $region16
        $region15: #{tpu_custom_call.1} parent=11 // pred_region
          _
        $region16: #{tpu_custom_call.1} parent=11 // pred_fallthru
          _
        // Predicated region
        $region17: #{tpu_custom_call.1} parent=11 // pred_check
          %p212 = pneg %p84
        $region18: #{tpu_custom_call.1} parent=11 // pred_check_branch
          %214 = sbr.rel (%p212) target = $region20
        $region19: #{tpu_custom_call.1} parent=11 // pred_region
          _
        $region20: #{tpu_custom_call.1} parent=11 // pred_fallthru
          _
        // Predicated region
        $region21: #{tpu_custom_call.1} parent=11 // pred_check
          %p215 = pneg %p105
        $region22: #{tpu_custom_call.1} parent=11 // pred_check_branch
          %217 = sbr.rel (%p215) target = $region24
        $region23: #{tpu_custom_call.1} parent=11 // pred_region
          _
        $region24: #{tpu_custom_call.1} parent=11 // pred_fallthru
          _
        // Predicated region
        $region25: #{tpu_custom_call.1} parent=11 // pred_check
          %p218 = pneg %p126
        $region26: #{tpu_custom_call.1} parent=11 // pred_check_branch
          %220 = sbr.rel (%p218) target = $region28
        $region27: #{tpu_custom_call.1} parent=11 // pred_region
          _
        $region28: #{tpu_custom_call.1} parent=11 // pred_fallthru
          _
        // Predicated region
        $region29: #{tpu_custom_call.1} parent=11 // pred_check
          %p221 = pneg %p147
        $region30: #{tpu_custom_call.1} parent=11 // pred_check_branch
          %223 = sbr.rel (%p221) target = $region32
        $region31: #{tpu_custom_call.1} parent=11 // pred_region
          _
        $region32: #{tpu_custom_call.1} parent=11 // pred_fallthru
          _
        // Predicated region
        $region33: #{tpu_custom_call.1} parent=11 // pred_check
          %p224 = pneg %p168
        $region34: #{tpu_custom_call.1} parent=11 // pred_check_branch
          %226 = sbr.rel (%p224) target = $region36
        $region35: #{tpu_custom_call.1} parent=11 // pred_region
          _
        $region36: #{tpu_custom_call.1} parent=11 // pred_fallthru
          _
      $region12: #{tpu_custom_call.1} parent=5 // pred_fallthru
        _
      %p227 = scmp.lt.s32.totalorder %s16, 2
      // Predicated region
      $region37: #{tpu_custom_call.1} parent=5 // pred_check
        %p228 = pneg %p227
      $region38: #{tpu_custom_call.1} parent=5 // pred_check_branch
        %230 = sbr.rel (%p228) target = $region40
      $region39: #{tpu_custom_call.1} parent=5 // pred_region
        // Predicated region
        $region41: #{tpu_custom_call.1} parent=39 // pred_check
          %p231 = pneg %p36
        $region42: #{tpu_custom_call.1} parent=39 // pred_check_branch
          %233 = sbr.rel (%p231) target = $region44
        $region43: #{tpu_custom_call.1} parent=39 // pred_region
          %p234 = scmp.lt.s32.totalorder %s16, 1
          %s235 = scalar_select %p234, %s16, 1
          %s236 = smul.addr %s235, 2
          %s237 = scalar_lea.vmem %s0, %s236
        $region44: #{tpu_custom_call.1} parent=39 // pred_fallthru
          _
      $region40: #{tpu_custom_call.1} parent=5 // pred_fallthru
        _
      %p238 = scmp.le.s32.totalorder 1, %s16
      %p239 = scmp.lt.s32.totalorder %s16, 3
      %p240 = pnand %p238, %p239
      %p241 = pneg %p240
      // Predicated region
      $region45: #{tpu_custom_call.1} parent=5 // pred_check
        _
      $region46: #{tpu_custom_call.1} parent=5 // pred_check_branch
        %243 = sbr.rel (%p240) target = $region48
      $region47: #{tpu_custom_call.1} parent=5 // pred_region
        %s244 = ssub.s32 %s16, 1
        %p245 = scmp.lt.s32.totalorder %s21, 1
        %s246 = scalar_select %p245, %s21, 1
        %s247 = smul.addr %s246, 2
        %s248 = scalar_lea.vmem %s0, %s247
        %p249 = pneg %p42
        %p250 = pneg %p39
        %p251 = pneg %p63
        %p252 = pneg %p60
        %p253 = pneg %p84
        %p254 = pneg %p81
        %p255 = pneg %p105
        %p256 = pneg %p102
        %p257 = pneg %p126
        %p258 = pneg %p123
        %p259 = pneg %p147
        %p260 = pneg %p144
        %p261 = pneg %p168
        %p262 = pneg %p165
        %p263 = pneg %p194
        %p264 = pneg %p191
        %s265 = sand.u32 %s181, 1
        %s266 = scalar_lea.sflag [#allocation3], %s265
        %s267 = sand.u32 %s181, 1
        %s268 = smul.addr %s267, 4
        %s269 = scalar_lea.vmem [#allocation2], %s268
        %p270 = scmp.lt.s32.totalorder %s21, 1
        %s271 = scalar_select %p270, %s21, 1
        %s272 = smul.addr %s271, 2
        %s273 = scalar_lea.vmem %s0, %s272
        %v274 = vld [vmem:[%s273] sm:$0x3]
        %v275 = vld [vmem:[%s1] sm:$0xff]
        %v276 = vld [vmem:[%s1 + $0x8] sm:$0xff]
        %v277 = vld [vmem:[%s1 + $0x10] sm:$0xff]
        %v278 = vld [vmem:[%s1 + $0x18] sm:$0xff]
        %v279 = vld [vmem:[%s2] sm:$0xff]
        %v280 = vld [vmem:[%s2 + $0x8] sm:$0xff]
        %v281 = vld [vmem:[%s2 + $0x10] sm:$0xff]
        %v282 = vld [vmem:[%s2 + $0x18] sm:$0xff]
        %284 = vset.pattern.permute.xlu0 0
        %285 = vperm.xlu0 %284, %v279
        %v286 = vpop.permute.xlu0 %285
        %289 = vset.pattern.permute.xlu0 0
        %290 = vperm.xlu0 %289, %v280
        %v291 = vpop.permute.xlu0 %290
        %294 = vset.pattern.permute.xlu0 0
        %295 = vperm.xlu0 %294, %v281
        %v296 = vpop.permute.xlu0 %295
        %299 = vset.pattern.permute.xlu0 0
        %300 = vperm.xlu0 %299, %v282
        %v301 = vpop.permute.xlu0 %300
        %vm303 = vcmask 15360
        %v305 = vsel %vm303, %v275, 0
        %v308 = vsel %vm303, %v276, 0
        %v311 = vsel %vm303, %v277, 0
        %v314 = vsel %vm303, %v278, 0
        %vm316 = vcmask 1041408
        %v318 = vsel %vm316, %v274, 0
        %320 = vmatprep.subr.mxu0 0.0
        %321 = vmatpush1.msra.mxu0 %v318
        %322 = vmatprep.subr.mxu0 0.0
        %323 = vmatpush1.msra.mxu0 0.0
        %324 = vmatprep.subr.mxu0 0.0
        %325 = vmatpush1.msra.mxu0 0.0
        %326 = vmatprep.subr.mxu0 0.0
        %327 = vmatpush1.msra.mxu0 0.0
        %328 = vmatprep.subr.mxu0 0.0
        %329 = vmatpush1.msra.mxu0 0.0
        %330 = vmatprep.subr.mxu0 0.0
        %331 = vmatpush1.msra.mxu0 0.0
        %332 = vmatprep.subr.mxu0 0.0
        %333 = vmatpush1.msra.mxu0 0.0
        %334 = vmatprep.subr.mxu0 0.0
        %335 = vmatpush1.msra.mxu0 0.0
        %336 = vmatprep.subr.mxu0 0.0
        %337 = vmatpush1.msra.mxu0 0.0
        %338 = vmatprep.subr.mxu0 0.0
        %339 = vmatpush1.msra.mxu0 0.0
        %340 = vmatprep.subr.mxu0 0.0
        %341 = vmatpush1.msra.mxu0 0.0
        %342 = vmatprep.subr.mxu0 0.0
        %343 = vmatpush1.msra.mxu0 0.0
        %344 = vmatprep.subr.mxu0 0.0
        %345 = vmatpush1.msra.mxu0 0.0
        %346 = vmatprep.subr.mxu0 0.0
        %347 = vmatpush1.msra.mxu0 0.0
        %348 = vmatprep.subr.mxu0 0.0
        %349 = vmatpush1.msra.mxu0 0.0
        %350 = vmatprep.subr.mxu0 0.0
        %351 = vmatpush1.msra.mxu0 0.0
        %352 = vmatprep.subr.mxu0 0.0
        %353 = vmatpush1.msra.mxu0 0.0
        %354 = vmatprep.subr.mxu0 0.0
        %355 = vmatpush1.msra.mxu0 0.0
        %356 = vmatprep.subr.mxu0 0.0
        %357 = vmatpush1.msra.mxu0 0.0
        %358 = vmatprep.subr.mxu0 0.0
        %359 = vmatpush1.msra.mxu0 0.0
        %360 = vmatprep.subr.mxu0 0.0
        %361 = vmatpush1.msra.mxu0 0.0
        %362 = vmatprep.subr.mxu0 0.0
        %363 = vmatpush1.msra.mxu0 0.0
        %364 = vmatprep.subr.mxu0 0.0
        %365 = vmatpush1.msra.mxu0 0.0
        %366 = vmatprep.subr.mxu0 0.0
        %367 = vmatpush1.msra.mxu0 0.0
        %368 = vmatprep.subr.mxu0 0.0
        %369 = vmatpush1.msra.mxu0 0.0
        %370 = vmatprep.subr.mxu0 0.0
        %371 = vmatpush1.msra.mxu0 0.0
        %372 = vmatprep.subr.mxu0 0.0
        %373 = vmatpush1.msra.mxu0 0.0
        %374 = vmatprep.subr.mxu0 0.0
        %375 = vmatpush1.msra.mxu0 0.0
        %376 = vmatprep.subr.mxu0 0.0
        %377 = vmatpush1.msra.mxu0 0.0
        %378 = vmatprep.subr.mxu0 0.0
        %379 = vmatpush1.msra.mxu0 0.0
        %380 = vmatprep.subr.mxu0 0.0
        %381 = vmatpush1.msra.mxu0 0.0
        %382 = vmatprep.subr.mxu0 0.0
        %383 = vmatpush1.msra.mxu0 0.0
        %384 = vmatprep.mubr.f32.mxu0 0.0
        %385 = vmatmul.mubr.f32.gmra.mrb[0].mxu0 %v305
        %v386 = vpop.f32.mrb[0].mxu0
        %v387 = vadd.f32 %v286, %v386
        %v388 = vpop.f32.mrb[0].mxu0
        %389 = vmatprep.mubr.f32.mxu0 0.0
        %390 = vmatmul.mubr.f32.gmra.mrb[0].mxu0 %v308
        %v391 = vpop.f32.mrb[0].mxu0
        %v392 = vadd.f32 %v291, %v391
        %v393 = vpop.f32.mrb[0].mxu0
        %394 = vmatprep.mubr.f32.mxu0 0.0
        %395 = vmatmul.mubr.f32.gmra.mrb[0].mxu0 %v311
        %v396 = vpop.f32.mrb[0].mxu0
        %v397 = vadd.f32 %v296, %v396
        %v398 = vpop.f32.mrb[0].mxu0
        %399 = vmatprep.mubr.f32.mxu0 0.0
        %400 = vmatmul.mubr.f32.gmra.mrb[0].mxu0 %v314
        %v401 = vpop.f32.mrb[0].mxu0
        %v402 = vadd.f32 %v301, %v401
        %v403 = vpop.f32.mrb[0].mxu0
        %404 = vdwg.mxu0
        %v405 = vmul.f32 %v387, 0.31830987
        %v406 = vmul.f32 %v392, 0.31830987
        %v407 = vmul.f32 %v397, 0.31830987
        %v408 = vmul.f32 %v402, 0.31830987
        %v409 = vadd.f32 %v405, 0.5
        %v410 = vadd.f32 %v406, 0.5
        %v411 = vadd.f32 %v407, 0.5
        %v412 = vadd.f32 %v408, 0.5
        %v413 = vfloor.f32 %v409
        %v414 = vfloor.f32 %v410
        %v415 = vfloor.f32 %v411
        %v416 = vfloor.f32 %v412
        %v417 = vmul.f32 %v413, 3.140625
        %v418 = vmul.f32 %v414, 3.140625
        %v419 = vmul.f32 %v415, 3.140625
        %v420 = vmul.f32 %v416, 3.140625
        %v421 = vsub.f32 %v387, %v417
        %v422 = vsub.f32 %v392, %v418
        %v423 = vsub.f32 %v397, %v419
        %v424 = vsub.f32 %v402, %v420
        %v425 = vmul.f32 %v413, 0.0009676536
        %v426 = vmul.f32 %v414, 0.0009676536
        %v427 = vmul.f32 %v415, 0.0009676536
        %v428 = vmul.f32 %v416, 0.0009676536
        %v429 = vsub.f32 %v421, %v425
        %v430 = vsub.f32 %v422, %v426
        %v431 = vsub.f32 %v423, %v427
        %v432 = vsub.f32 %v424, %v428
        %v433 = vmul.f32 %v429, %v429
        %v434 = vmul.f32 %v430, %v430
        %v435 = vmul.f32 %v431, %v431
        %v436 = vmul.f32 %v432, %v432
        %v437 = vmul.f32 %v433, -2.5052108e-08
        %v438 = vmul.f32 %v434, -2.5052108e-08
        %v439 = vmul.f32 %v435, -2.5052108e-08
        %v440 = vmul.f32 %v436, -2.5052108e-08
        %v441 = vadd.f32 %v437, 2.7557319e-06
        %v442 = vadd.f32 %v438, 2.7557319e-06
        %v443 = vadd.f32 %v439, 2.7557319e-06
        %v444 = vadd.f32 %v440, 2.7557319e-06
        %v445 = vmul.f32 %v441, %v433
        %v446 = vmul.f32 %v442, %v434
        %v447 = vmul.f32 %v443, %v435
        %v448 = vmul.f32 %v444, %v436
        %v449 = vadd.f32 %v445, -0.0001984127
        %v450 = vadd.f32 %v446, -0.0001984127
        %v451 = vadd.f32 %v447, -0.0001984127
        %v452 = vadd.f32 %v448, -0.0001984127
        %v453 = vmul.f32 %v449, %v433
        %v454 = vmul.f32 %v450, %v434
        %v455 = vmul.f32 %v451, %v435
        %v456 = vmul.f32 %v452, %v436
        %v457 = vadd.f32 %v453, 0.008333334
        %v458 = vadd.f32 %v454, 0.008333334
        %v459 = vadd.f32 %v455, 0.008333334
        %v460 = vadd.f32 %v456, 0.008333334
        %v461 = vmul.f32 %v457, %v433
        %v462 = vmul.f32 %v458, %v434
        %v463 = vmul.f32 %v459, %v435
        %v464 = vmul.f32 %v460, %v436
        %v465 = vadd.f32 %v461, -0.16666667
        %v466 = vadd.f32 %v462, -0.16666667
        %v467 = vadd.f32 %v463, -0.16666667
        %v468 = vadd.f32 %v464, -0.16666667
        %v469 = vmul.f32 %v465, %v433
        %v470 = vmul.f32 %v466, %v434
        %v471 = vmul.f32 %v467, %v435
        %v472 = vmul.f32 %v468, %v436
        %v473 = vadd.f32 %v469, 1.0
        %v474 = vadd.f32 %v470, 1.0
        %v475 = vadd.f32 %v471, 1.0
        %v476 = vadd.f32 %v472, 1.0
        %v477 = vmul.f32 %v473, %v429
        %v478 = vmul.f32 %v474, %v430
        %v479 = vmul.f32 %v475, %v431
        %v480 = vmul.f32 %v476, %v432
        %v481 = vcvt.f32.s32.to.zero.pseudo %v413
        %v482 = vcvt.f32.s32.to.zero.pseudo %v414
        %v483 = vcvt.f32.s32.to.zero.pseudo %v415
        %v484 = vcvt.f32.s32.to.zero.pseudo %v416
        %v485 = vand.u32 %v481, 1
        %v486 = vand.u32 %v482, 1
        %v487 = vand.u32 %v483, 1
        %v488 = vand.u32 %v484, 1
        %vm489 = vcmp.ne.s32.totalorder %v485, 0
        %vm490 = vcmp.ne.s32.totalorder %v486, 0
        %vm491 = vcmp.ne.s32.totalorder %v487, 0
        %vm492 = vcmp.ne.s32.totalorder %v488, 0
        %v493 = vsub.f32 0.0, %v477
        %v494 = vsub.f32 0.0, %v478
        %v495 = vsub.f32 0.0, %v479
        %v496 = vsub.f32 0.0, %v480
        %v497 = vsel %vm489, %v493, %v477
        %v498 = vsel %vm490, %v494, %v478
        %v499 = vsel %vm491, %v495, %v479
        %v500 = vsel %vm492, %v496, %v480
        %v501 = vld [vmem:[%s3] sm:$0xff]
        %v502 = vld [vmem:[%s3 + $0x8] sm:$0xff]
        %v503 = vld [vmem:[%s3 + $0x10] sm:$0xff]
        %v504 = vld [vmem:[%s3 + $0x18] sm:$0xff]
        %v505 = vld [vmem:[%s4] sm:$0xff]
        %v506 = vld [vmem:[%s4 + $0x8] sm:$0xff]
        %v507 = vld [vmem:[%s4 + $0x10] sm:$0xff]
        %v508 = vld [vmem:[%s4 + $0x18] sm:$0xff]
        %510 = vset.pattern.permute.xlu0 0
        %511 = vperm.xlu0 %510, %v505
        %v512 = vpop.permute.xlu0 %511
        %515 = vset.pattern.permute.xlu0 0
        %516 = vperm.xlu0 %515, %v506
        %v517 = vpop.permute.xlu0 %516
        %520 = vset.pattern.permute.xlu0 0
        %521 = vperm.xlu0 %520, %v507
        %v522 = vpop.permute.xlu0 %521
        %525 = vset.pattern.permute.xlu0 0
        %526 = vperm.xlu0 %525, %v508
        %v527 = vpop.permute.xlu0 %526
        %vm529 = vcmask 261120
        %v531 = vsel %vm529, %v501, 0
        %v534 = vsel %vm529, %v502, 0
        %v537 = vsel %vm529, %v503, 0
        %v540 = vsel %vm529, %v504, 0
        %542 = vmatprep.subr.mxu0 0.0
        %543 = vmatpush1.msra.mxu0 %v497
        %544 = vmatprep.subr.mxu0 0.0
        %545 = vmatpush1.msra.mxu0 %v498
        %546 = vmatprep.subr.mxu0 0.0
        %547 = vmatpush1.msra.mxu0 %v499
        %548 = vmatprep.subr.mxu0 0.0
        %549 = vmatpush1.msra.mxu0 %v500
        %550 = vmatprep.subr.mxu0 0.0
        %551 = vmatpush1.msra.mxu0 0.0
        %552 = vmatprep.subr.mxu0 0.0
        %553 = vmatpush1.msra.mxu0 0.0
        %554 = vmatprep.subr.mxu0 0.0
        %555 = vmatpush1.msra.mxu0 0.0
        %556 = vmatprep.subr.mxu0 0.0
        %557 = vmatpush1.msra.mxu0 0.0
        %558 = vmatprep.subr.mxu0 0.0
        %559 = vmatpush1.msra.mxu0 0.0
        %560 = vmatprep.subr.mxu0 0.0
        %561 = vmatpush1.msra.mxu0 0.0
        %562 = vmatprep.subr.mxu0 0.0
        %563 = vmatpush1.msra.mxu0 0.0
        %564 = vmatprep.subr.mxu0 0.0
        %565 = vmatpush1.msra.mxu0 0.0
        %566 = vmatprep.subr.mxu0 0.0
        %567 = vmatpush1.msra.mxu0 0.0
        %568 = vmatprep.subr.mxu0 0.0
        %569 = vmatpush1.msra.mxu0 0.0
        %570 = vmatprep.subr.mxu0 0.0
        %571 = vmatpush1.msra.mxu0 0.0
        %572 = vmatprep.subr.mxu0 0.0
        %573 = vmatpush1.msra.mxu0 0.0
        %574 = vmatprep.subr.mxu0 0.0
        %575 = vmatpush1.msra.mxu0 0.0
        %576 = vmatprep.subr.mxu0 0.0
        %577 = vmatpush1.msra.mxu0 0.0
        %578 = vmatprep.subr.mxu0 0.0
        %579 = vmatpush1.msra.mxu0 0.0
        %580 = vmatprep.subr.mxu0 0.0
        %581 = vmatpush1.msra.mxu0 0.0
        %582 = vmatprep.subr.mxu0 0.0
        %583 = vmatpush1.msra.mxu0 0.0
        %584 = vmatprep.subr.mxu0 0.0
        %585 = vmatpush1.msra.mxu0 0.0
        %586 = vmatprep.subr.mxu0 0.0
        %587 = vmatpush1.msra.mxu0 0.0
        %588 = vmatprep.subr.mxu0 0.0
        %589 = vmatpush1.msra.mxu0 0.0
        %590 = vmatprep.subr.mxu0 0.0
        %591 = vmatpush1.msra.mxu0 0.0
        %592 = vmatprep.subr.mxu0 0.0
        %593 = vmatpush1.msra.mxu0 0.0
        %594 = vmatprep.subr.mxu0 0.0
        %595 = vmatpush1.msra.mxu0 0.0
        %596 = vmatprep.subr.mxu0 0.0
        %597 = vmatpush1.msra.mxu0 0.0
        %598 = vmatprep.subr.mxu0 0.0
        %599 = vmatpush1.msra.mxu0 0.0
        %600 = vmatprep.subr.mxu0 0.0
        %601 = vmatpush1.msra.mxu0 0.0
        %602 = vmatprep.subr.mxu0 0.0
        %603 = vmatpush1.msra.mxu0 0.0
        %604 = vmatprep.subr.mxu0 0.0
        %605 = vmatpush1.msra.mxu0 0.0
        %606 = vmatprep.mubr.f32.mxu0 0.0
        %607 = vmatmul.mubr.f32.gmra.mrb[0].mxu0 %v531
        %v608 = vpop.f32.mrb[0].mxu0
        %v609 = vadd.f32 %v512, %v608
        %v610 = vpop.f32.mrb[0].mxu0
        %611 = vmatprep.mubr.f32.mxu0 0.0
        %612 = vmatmul.mubr.f32.gmra.mrb[0].mxu0 %v534
        %v613 = vpop.f32.mrb[0].mxu0
        %v614 = vadd.f32 %v517, %v613
        %v615 = vpop.f32.mrb[0].mxu0
        %616 = vmatprep.mubr.f32.mxu0 0.0
        %617 = vmatmul.mubr.f32.gmra.mrb[0].mxu0 %v537
        %v618 = vpop.f32.mrb[0].mxu0
        %v619 = vadd.f32 %v522, %v618
        %v620 = vpop.f32.mrb[0].mxu0
        %621 = vmatprep.mubr.f32.mxu0 0.0
        %622 = vmatmul.mubr.f32.gmra.mrb[0].mxu0 %v540
        %v623 = vpop.f32.mrb[0].mxu0
        %v624 = vadd.f32 %v527, %v623
        %v625 = vpop.f32.mrb[0].mxu0
        %626 = vdwg.mxu0
        %v627 = vmul.f32 %v609, 0.31830987
        %v628 = vmul.f32 %v614, 0.31830987
        %v629 = vmul.f32 %v619, 0.31830987
        %v630 = vmul.f32 %v624, 0.31830987
        %v631 = vadd.f32 %v627, 0.5
        %v632 = vadd.f32 %v628, 0.5
        %v633 = vadd.f32 %v629, 0.5
        %v634 = vadd.f32 %v630, 0.5
        %v635 = vfloor.f32 %v631
        %v636 = vfloor.f32 %v632
        %v637 = vfloor.f32 %v633
        %v638 = vfloor.f32 %v634
        %v639 = vmul.f32 %v635, 3.140625
        %v640 = vmul.f32 %v636, 3.140625
        %v641 = vmul.f32 %v637, 3.140625
        %v642 = vmul.f32 %v638, 3.140625
        %v643 = vsub.f32 %v609, %v639
        %v644 = vsub.f32 %v614, %v640
        %v645 = vsub.f32 %v619, %v641
        %v646 = vsub.f32 %v624, %v642
        %v647 = vmul.f32 %v635, 0.0009676536
        %v648 = vmul.f32 %v636, 0.0009676536
        %v649 = vmul.f32 %v637, 0.0009676536
        %v650 = vmul.f32 %v638, 0.0009676536
        %v651 = vsub.f32 %v643, %v647
        %v652 = vsub.f32 %v644, %v648
        %v653 = vsub.f32 %v645, %v649
        %v654 = vsub.f32 %v646, %v650
        %v655 = vmul.f32 %v651, %v651
        %v656 = vmul.f32 %v652, %v652
        %v657 = vmul.f32 %v653, %v653
        %v658 = vmul.f32 %v654, %v654
        %v659 = vmul.f32 %v655, -2.5052108e-08
        %v660 = vmul.f32 %v656, -2.5052108e-08
        %v661 = vmul.f32 %v657, -2.5052108e-08
        %v662 = vmul.f32 %v658, -2.5052108e-08
        %v663 = vadd.f32 %v659, 2.7557319e-06
        %v664 = vadd.f32 %v660, 2.7557319e-06
        %v665 = vadd.f32 %v661, 2.7557319e-06
        %v666 = vadd.f32 %v662, 2.7557319e-06
        %v667 = vmul.f32 %v663, %v655
        %v668 = vmul.f32 %v664, %v656
        %v669 = vmul.f32 %v665, %v657
        %v670 = vmul.f32 %v666, %v658
        %v671 = vadd.f32 %v667, -0.0001984127
        %v672 = vadd.f32 %v668, -0.0001984127
        %v673 = vadd.f32 %v669, -0.0001984127
        %v674 = vadd.f32 %v670, -0.0001984127
        %v675 = vmul.f32 %v671, %v655
        %v676 = vmul.f32 %v672, %v656
        %v677 = vmul.f32 %v673, %v657
        %v678 = vmul.f32 %v674, %v658
        %v679 = vadd.f32 %v675, 0.008333334
        %v680 = vadd.f32 %v676, 0.008333334
        %v681 = vadd.f32 %v677, 0.008333334
        %v682 = vadd.f32 %v678, 0.008333334
        %v683 = vmul.f32 %v679, %v655
        %v684 = vmul.f32 %v680, %v656
        %v685 = vmul.f32 %v681, %v657
        %v686 = vmul.f32 %v682, %v658
        %v687 = vadd.f32 %v683, -0.16666667
        %v688 = vadd.f32 %v684, -0.16666667
        %v689 = vadd.f32 %v685, -0.16666667
        %v690 = vadd.f32 %v686, -0.16666667
        %v691 = vmul.f32 %v687, %v655
        %v692 = vmul.f32 %v688, %v656
        %v693 = vmul.f32 %v689, %v657
        %v694 = vmul.f32 %v690, %v658
        %v695 = vadd.f32 %v691, 1.0
        %v696 = vadd.f32 %v692, 1.0
        %v697 = vadd.f32 %v693, 1.0
        %v698 = vadd.f32 %v694, 1.0
        %v699 = vmul.f32 %v695, %v651
        %v700 = vmul.f32 %v696, %v652
        %v701 = vmul.f32 %v697, %v653
        %v702 = vmul.f32 %v698, %v654
        %v703 = vcvt.f32.s32.to.zero.pseudo %v635
        %v704 = vcvt.f32.s32.to.zero.pseudo %v636
        %v705 = vcvt.f32.s32.to.zero.pseudo %v637
        %v706 = vcvt.f32.s32.to.zero.pseudo %v638
        %v707 = vand.u32 %v703, 1
        %v708 = vand.u32 %v704, 1
        %v709 = vand.u32 %v705, 1
        %v710 = vand.u32 %v706, 1
        %vm711 = vcmp.ne.s32.totalorder %v707, 0
        %vm712 = vcmp.ne.s32.totalorder %v708, 0
        %vm713 = vcmp.ne.s32.totalorder %v709, 0
        %vm714 = vcmp.ne.s32.totalorder %v710, 0
        %v715 = vsub.f32 0.0, %v699
        %v716 = vsub.f32 0.0, %v700
        %v717 = vsub.f32 0.0, %v701
        %v718 = vsub.f32 0.0, %v702
        %v719 = vsel %vm711, %v715, %v699
        %v720 = vsel %vm712, %v716, %v700
        %v721 = vsel %vm713, %v717, %v701
        %v722 = vsel %vm714, %v718, %v702
        %v723 = vld [vmem:[%s5] sm:$0x7]
        %v724 = vld [vmem:[%s6] sm:$0x7]
        %726 = vset.pattern.permute.xlu0 0
        %727 = vperm.xlu0 %726, %v724
        %v728 = vpop.permute.xlu0 %727
        %v731 = vsel %vm529, %v723, 0
        %733 = vmatprep.subr.mxu0 0.0
        %734 = vmatpush1.msra.mxu0 %v719
        %735 = vmatprep.subr.mxu0 0.0
        %736 = vmatpush1.msra.mxu0 %v720
        %737 = vmatprep.subr.mxu0 0.0
        %738 = vmatpush1.msra.mxu0 %v721
        %739 = vmatprep.subr.mxu0 0.0
        %740 = vmatpush1.msra.mxu0 %v722
        %741 = vmatprep.subr.mxu0 0.0
        %742 = vmatpush1.msra.mxu0 0.0
        %743 = vmatprep.subr.mxu0 0.0
        %744 = vmatpush1.msra.mxu0 0.0
        %745 = vmatprep.subr.mxu0 0.0
        %746 = vmatpush1.msra.mxu0 0.0
        %747 = vmatprep.subr.mxu0 0.0
        %748 = vmatpush1.msra.mxu0 0.0
        %749 = vmatprep.subr.mxu0 0.0
        %750 = vmatpush1.msra.mxu0 0.0
        %751 = vmatprep.subr.mxu0 0.0
        %752 = vmatpush1.msra.mxu0 0.0
        %753 = vmatprep.subr.mxu0 0.0
        %754 = vmatpush1.msra.mxu0 0.0
        %755 = vmatprep.subr.mxu0 0.0
        %756 = vmatpush1.msra.mxu0 0.0
        %757 = vmatprep.subr.mxu0 0.0
        %758 = vmatpush1.msra.mxu0 0.0
        %759 = vmatprep.subr.mxu0 0.0
        %760 = vmatpush1.msra.mxu0 0.0
        %761 = vmatprep.subr.mxu0 0.0
        %762 = vmatpush1.msra.mxu0 0.0
        %763 = vmatprep.subr.mxu0 0.0
        %764 = vmatpush1.msra.mxu0 0.0
        %765 = vmatprep.subr.mxu0 0.0
        %766 = vmatpush1.msra.mxu0 0.0
        %767 = vmatprep.subr.mxu0 0.0
        %768 = vmatpush1.msra.mxu0 0.0
        %769 = vmatprep.subr.mxu0 0.0
        %770 = vmatpush1.msra.mxu0 0.0
        %771 = vmatprep.subr.mxu0 0.0
        %772 = vmatpush1.msra.mxu0 0.0
        %773 = vmatprep.subr.mxu0 0.0
        %774 = vmatpush1.msra.mxu0 0.0
        %775 = vmatprep.subr.mxu0 0.0
        %776 = vmatpush1.msra.mxu0 0.0
        %777 = vmatprep.subr.mxu0 0.0
        %778 = vmatpush1.msra.mxu0 0.0
        %779 = vmatprep.subr.mxu0 0.0
        %780 = vmatpush1.msra.mxu0 0.0
        %781 = vmatprep.subr.mxu0 0.0
        %782 = vmatpush1.msra.mxu0 0.0
        %783 = vmatprep.subr.mxu0 0.0
        %784 = vmatpush1.msra.mxu0 0.0
        %785 = vmatprep.subr.mxu0 0.0
        %786 = vmatpush1.msra.mxu0 0.0
        %787 = vmatprep.subr.mxu0 0.0
        %788 = vmatpush1.msra.mxu0 0.0
        %789 = vmatprep.subr.mxu0 0.0
        %790 = vmatpush1.msra.mxu0 0.0
        %791 = vmatprep.subr.mxu0 0.0
        %792 = vmatpush1.msra.mxu0 0.0
        %793 = vmatprep.subr.mxu0 0.0
        %794 = vmatpush1.msra.mxu0 0.0
        %795 = vmatprep.subr.mxu0 0.0
        %796 = vmatpush1.msra.mxu0 0.0
        %797 = vmatprep.mubr.f32.mxu0 0.0
        %798 = vmatmul.mubr.f32.gmra.mrb[0].mxu0 %v731
        %v799 = vpop.f32.mrb[0].mxu0
        %v800 = vadd.f32 %v728, %v799
        %v801 = vpop.f32.mrb[0].mxu0
        %802 = vdwg.mxu0
        %803 = vst [vmem:[%s269] sm:$0x7] %v800
        %s804 = sand.u32 %s181, 1
        %s805 = scalar_lea.sflag [#allocation3], %s804
        %s806 = sand.u32 %s181, 1
        %s807 = smul.addr %s806, 4
        %s808 = scalar_lea.vmem [#allocation2], %s807
        // Predicated region
        $region49: #{tpu_custom_call.1} parent=47 // pred_check
          %p809 = pneg %p191
        $region50: #{tpu_custom_call.1} parent=47 // pred_check_branch
          %811 = sbr.rel (%p809) target = $region52
        $region51: #{tpu_custom_call.1} parent=47 // pred_region
          %s813 = ssub.s32 64, 64
          %814 = vsyncadd %s805, %s813
          %s815 = smul.addr %s21, 64
          %s816 = scalar_lea.hbm %s7, %s815
          %s818 = sshll.u32 %s808, 4
          %s819 = int_to_ptr.vmem [resolvable:$true] %s818
          %821 = dma.vmem_to_hbm [thread:$0]  %s819, 64, %s816, %s805
        $region52: #{tpu_custom_call.1} parent=47 // pred_fallthru
          _
      $region48: #{tpu_custom_call.1} parent=5 // pred_fallthru
        _
      %p822 = scmp.le.s32.totalorder 2, %s16
      // Predicated region
      $region53: #{tpu_custom_call.1} parent=5 // pred_check
        %p823 = pneg %p822
      $region54: #{tpu_custom_call.1} parent=5 // pred_check_branch
        %825 = sbr.rel (%p823) target = $region56
      $region55: #{tpu_custom_call.1} parent=5 // pred_region
        %s826 = ssub.s32 %s16, 2
        // Predicated region
        $region57: #{tpu_custom_call.1} parent=55 // pred_check
          %p827 = pneg %p197
        $region58: #{tpu_custom_call.1} parent=55 // pred_check_branch
          %829 = sbr.rel (%p827) target = $region60
        $region59: #{tpu_custom_call.1} parent=55 // pred_region
          %s830 = sand.u32 %s182, 1
          %s831 = scalar_lea.sflag [#allocation3], %s830
          %s832 = sand.u32 %s182, 1
          %s833 = smul.addr %s832, 4
          %s834 = scalar_lea.vmem [#allocation2], %s833
          %835 = dma.done %s831, 64
        $region60: #{tpu_custom_call.1} parent=55 // pred_fallthru
          _
      $region56: #{tpu_custom_call.1} parent=5 // pred_fallthru
        _
    $region6: #{tpu_custom_call.1} parent=1 // loop_footer
      %s20 = sadd.s32 1, %s16
    $region7: #{tpu_custom_call.1} parent=1 // loop_footer_branch
      %15 = sbr.rel target = $region3
    $region8: #{tpu_custom_call.1} parent=1 // loop_exit
      _
    %836 = vsyncpa [#allocation3], 1
    %s837 = scalar_lea.sflag [#allocation3], 1
    %838 = vsyncpa %s837, 1

</llo_original>
